<compile_context>
chip_gen: v7x
topology: tpu7x:2x2x1
jax: 0.10.0
libtpu: 0.0.40
codegen_flags: <defaults>
</compile_context>

<pallas_src>
import functools

import jax
import jax.numpy as jnp
from jax.experimental import pallas as pl
from jax.experimental.pallas import tpu as pltpu


# PyTorch nn.Linear layer dims (in_features, out_features).
_LAYER_DIMS = [(784, 512), (512, 256), (256, 128), (128, 64), (64, 10)]
_LANE = 128
_IN_FEATURES = 784
_NUM_CLASSES = 10


def _round_up(n, m):
    return ((n + m - 1) // m) * m


def _compute_padded_dims():
    # Only the *output* feature dims are lane-padded; each layer's input dim is
    # the previous layer's padded output.  784 is kept as-is (it equals the
    # full array dim of x, which satisfies the BlockSpec constraint).
    dims = []
    prev = _IN_FEATURES
    for _, n in _LAYER_DIMS:
        n_p = _round_up(n, _LANE)
        dims.append((prev, n_p))
        prev = n_p
    return dims


# [(784, 512), (512, 256), (256, 128), (128, 128), (128, 128)]
_PADDED_DIMS = _compute_padded_dims()


def _mlp_fused_kernel(x_ref, w1, w2, w3, w4, w5, b1, b2, b3, b4, b5, o_ref):
    """One batch tile through all 5 layers; everything stays in VMEM."""
    ws = (w1, w2, w3, w4, w5)
    bs = (b1, b2, b3, b4, b5)
    h = x_ref[...].astype(jnp.bfloat16)                      # [TM, 784] f32 -> bf16
    for i in range(len(ws)):
        y = jnp.dot(h, ws[i][...], preferred_element_type=jnp.float32)
        y = y + bs[i][...]                                   # (1, N) f32 broadcast
        if i + 1 < len(ws):
            h = jnp.maximum(y, 0.0).astype(jnp.bfloat16)     # ReLU, back to bf16
        else:
            o_ref[...] = y.astype(o_ref.dtype)               # last layer: no ReLU


def prepare_params(params):
    """Once-per-model weight prep: pad to lane-aligned dims, cast W to bf16.

    params: list of (w [in, out] f32, b [out] f32).  Returns (ws, bs) ready to
    feed straight into the pallas_call (no per-forward pad/cast traffic).
    """
    ws, bs = [], []
    for (w, b), (k_p, n_p) in zip(params, _PADDED_DIMS):
        k, n = w.shape
        ws.append(jnp.pad(w.astype(jnp.bfloat16), ((0, k_p - k), (0, n_p - n))))
        bs.append(jnp.pad(b.astype(jnp.float32), (0, n_p - n)).reshape(1, n_p))
    return tuple(ws), tuple(bs)


@functools.partial(jax.jit, static_argnames=("tm",))
def _net_forward_prepared(x2d, ws, bs, tm):
    """x2d: [M, 784] f32; ws/bs: pre-padded params from prepare_params."""
    m = x2d.shape[0]
    m_pad = _round_up(m, tm)
    # Only the batch (M) dim is padded; feature dim stays 784 and the f32->bf16
    # cast happens inside the kernel (no separate pad/cast pass over x in HBM).
    x_p = jnp.pad(x2d, ((0, m_pad - m), (0, 0)))

    n_tiles = m_pad // tm
    n_out_p = _PADDED_DIMS[-1][1]                            # 128

    flops = 2 * m_pad * sum(kp * np_ for kp, np_ in _PADDED_DIMS)
    bytes_accessed = (x_p.size * 4 + m_pad * n_out_p * 2
                      + sum(w.size * 2 for w in ws)
                      + sum(b.size * 4 for b in bs))

    in_specs = (
        [pl.BlockSpec((tm, _IN_FEATURES), lambda i: (i, 0))]            # x tile
        + [pl.BlockSpec((kp, np_), lambda i: (0, 0))                    # weights
           for kp, np_ in _PADDED_DIMS]
        + [pl.BlockSpec((1, np_), lambda i: (0, 0))                     # biases
           for _, np_ in _PADDED_DIMS]
    )

    out = pl.pallas_call(
        _mlp_fused_kernel,
        out_shape=jax.ShapeDtypeStruct((m_pad, n_out_p), jnp.bfloat16),
        grid=(n_tiles,),
        in_specs=in_specs,
        out_specs=pl.BlockSpec((tm, n_out_p), lambda i: (i, 0)),
        compiler_params=pltpu.CompilerParams(
            dimension_semantics=("parallel",),
            vmem_limit_bytes=48 * 1024 * 1024),
        cost_estimate=pl.CostEstimate(
            flops=flops, transcendentals=0, bytes_accessed=bytes_accessed),
    )(x_p, *ws, *bs)

    return out[:m, :_NUM_CLASSES].astype(jnp.float32)        # [M, 10] f32


def _pick_tm(m):
    if m < 256:
        # Single tile; multiple of 16 for bf16 sublane packing.
        return _round_up(max(m, 1), 16)
    # >= 256 rows: split into >= 2 balanced, 128-aligned tiles (shards across
    # v7x's two TensorCores), capped at 512 rows to stay well under every
    # generation's scoped-VMEM budget while amortizing per-step overhead.
    half = (m + 1) // 2
    return min(512, _round_up(half, 128))


def net_forward(x, prepared, *, tm=None):
    """Forward pass of `Net`: anything reshapeable to [-1, 784] -> logits."""
    x2d = x.reshape(-1, _IN_FEATURES).astype(jnp.float32)
    if tm is None:
        tm = _pick_tm(x2d.shape[0])
    ws, bs = prepared
    return _net_forward_prepared(x2d, ws, bs, tm)


# ---- deterministic parameter init (synthetic; shapes match nn.Linear) ----
def init_params(key):
    params = []
    for (fan_in, fan_out) in _LAYER_DIMS:
        key, kw, kb = jax.random.split(key, 3)
        bound = 1.0 / jnp.sqrt(fan_in)  # PyTorch default Linear init range
        w = jax.random.uniform(kw, (fan_in, fan_out), jnp.float32, -bound, bound)
        b = jax.random.uniform(kb, (fan_out,), jnp.float32, -bound, bound)
        params.append((w, b))
    return params


def _ref_forward(x, params):
    # Plain-JAX reference mirroring the kernel numerics:
    # bf16 matmul inputs, f32 accumulation, f32 bias add, ReLU except last,
    # final logits rounded through bf16 (matching the kernel's bf16 store).
    h = x.reshape(-1, _IN_FEATURES).astype(jnp.float32)
    for i, (w, b) in enumerate(params):
        h = jnp.dot(h.astype(jnp.bfloat16), w.astype(jnp.bfloat16),
                    preferred_element_type=jnp.float32) + b
        if i < len(params) - 1:
            h = jnp.maximum(h, 0.0)
    return h.astype(jnp.bfloat16).astype(jnp.float32)


if __name__ == "__main__":
    key = jax.random.PRNGKey(0)
    key, kx = jax.random.split(key)
    params = init_params(key)
    prepared = prepare_params(params)          # one-time weight prep (hoisted)

    # Small MNIST-like NCHW batch.
    batch = 2
    x = jax.random.normal(kx, (batch, 1, 28, 28), jnp.float32)
    logits = net_forward(x, prepared)
    jax.block_until_ready(logits)
    assert logits.shape == (batch, 10), logits.shape
    assert jnp.allclose(logits, _ref_forward(x, params), atol=1e-2, rtol=1e-2)

    # Single-tile path with a non-multiple-of-16 batch (M-padding exercised).
    xb = jax.random.normal(jax.random.PRNGKey(1), (130, 1, 28, 28), jnp.float32)
    logits_b = net_forward(xb, prepared)
    jax.block_until_ready(logits_b)
    assert logits_b.shape == (130, 10), logits_b.shape
    assert jnp.allclose(logits_b, _ref_forward(xb, params), atol=1e-2, rtol=1e-2)

    # Multi-tile path (grid = 2 balanced tiles -> both TensorCores on v7x).
    xc = jax.random.normal(jax.random.PRNGKey(2), (600, 1, 28, 28), jnp.float32)
    logits_c = net_forward(xc, prepared)
    jax.block_until_ready(logits_c)
    assert logits_c.shape == (600, 10), logits_c.shape
    assert jnp.allclose(logits_c, _ref_forward(xc, params), atol=1e-2, rtol=1e-2)

    print("KERNEL_OK")
</pallas_src>

<mosaic_0001>
module attributes {stable_mosaic.version = 11 : i64} {
  func.func @_mlp_fused_kernel(%arg0: i32, %arg1: memref<16x784xf32, #tpu.memory_space<vmem>>, %arg2: memref<784x512xbf16, #tpu.memory_space<vmem>>, %arg3: memref<512x256xbf16, #tpu.memory_space<vmem>>, %arg4: memref<256x128xbf16, #tpu.memory_space<vmem>>, %arg5: memref<128x128xbf16, #tpu.memory_space<vmem>>, %arg6: memref<128x128xbf16, #tpu.memory_space<vmem>>, %arg7: memref<1x512xf32, #tpu.memory_space<vmem>>, %arg8: memref<1x256xf32, #tpu.memory_space<vmem>>, %arg9: memref<1x128xf32, #tpu.memory_space<vmem>>, %arg10: memref<1x128xf32, #tpu.memory_space<vmem>>, %arg11: memref<1x128xf32, #tpu.memory_space<vmem>>, %arg12: memref<16x128xbf16, #tpu.memory_space<vmem>>) attributes {dimension_semantics = [#tpu.dimension_semantics<parallel>], iteration_bounds = array<i64: 1>, scalar_prefetch = 0 : i64, scratch_operands = 0 : i64, tpu.core_type = #tpu.core_type<tc>, window_params = [{transform_indices = @transform_0, window_bounds = array<i64: 16, 784>}, {pipeline_mode = #tpu.pipeline_mode<synchronous>, transform_indices = @transform_1, window_bounds = array<i64: 784, 512>}, {pipeline_mode = #tpu.pipeline_mode<synchronous>, transform_indices = @transform_2, window_bounds = array<i64: 512, 256>}, {pipeline_mode = #tpu.pipeline_mode<synchronous>, transform_indices = @transform_3, window_bounds = array<i64: 256, 128>}, {pipeline_mode = #tpu.pipeline_mode<synchronous>, transform_indices = @transform_4, window_bounds = array<i64: 128, 128>}, {pipeline_mode = #tpu.pipeline_mode<synchronous>, transform_indices = @transform_5, window_bounds = array<i64: 128, 128>}, {pipeline_mode = #tpu.pipeline_mode<synchronous>, transform_indices = @transform_6, window_bounds = array<i64: 1, 512>}, {pipeline_mode = #tpu.pipeline_mode<synchronous>, transform_indices = @transform_7, window_bounds = array<i64: 1, 256>}, {pipeline_mode = #tpu.pipeline_mode<synchronous>, transform_indices = @transform_8, window_bounds = array<i64: 1, 128>}, {pipeline_mode = #tpu.pipeline_mode<synchronous>, transform_indices = @transform_9, window_bounds = array<i64: 1, 128>}, {pipeline_mode = #tpu.pipeline_mode<synchronous>, transform_indices = @transform_10, window_bounds = array<i64: 1, 128>}, {transform_indices = @transform_11, window_bounds = array<i64: 16, 128>}]} {
    %c0 = arith.constant 0 : index
    %c0_0 = arith.constant 0 : index
    %0 = vector.load %arg1[%c0, %c0_0] : memref<16x784xf32, #tpu.memory_space<vmem>>, vector<16x784xf32>
    %1 = arith.truncf %0 : vector<16x784xf32> to vector<16x784xbf16>
    %c0_1 = arith.constant 0 : index
    %c0_2 = arith.constant 0 : index
    %2 = vector.load %arg2[%c0_1, %c0_2] : memref<784x512xbf16, #tpu.memory_space<vmem>>, vector<784x512xbf16>
    %cst = arith.constant dense<0.000000e+00> : vector<16x512xf32>
    %3 = tpu.matmul %1, %2, %cst {dimension_numbers = #tpu.dot_dimension_numbers<[1], [0], [0], [1], [0, 0, 1, 1], [], []>} : vector<16x784xbf16>, vector<784x512xbf16>, vector<16x512xf32> -> vector<16x512xf32>
    %c0_3 = arith.constant 0 : index
    %c0_4 = arith.constant 0 : index
    %4 = vector.load %arg7[%c0_3, %c0_4] : memref<1x512xf32, #tpu.memory_space<vmem>>, vector<1x512xf32>
    %5 = vector.broadcast %4 : vector<1x512xf32> to vector<16x512xf32>
    %6 = arith.addf %3, %5 : vector<16x512xf32>
    %cst_5 = arith.constant 0.000000e+00 : f32
    %7 = vector.broadcast %cst_5 : f32 to vector<16x512xf32>
    %8 = arith.maximumf %6, %7 : vector<16x512xf32>
    %9 = arith.truncf %8 : vector<16x512xf32> to vector<16x512xbf16>
    %c0_6 = arith.constant 0 : index
    %c0_7 = arith.constant 0 : index
    %10 = vector.load %arg3[%c0_6, %c0_7] : memref<512x256xbf16, #tpu.memory_space<vmem>>, vector<512x256xbf16>
    %cst_8 = arith.constant dense<0.000000e+00> : vector<16x256xf32>
    %11 = tpu.matmul %9, %10, %cst_8 {dimension_numbers = #tpu.dot_dimension_numbers<[1], [0], [0], [1], [0, 0, 1, 1], [], []>} : vector<16x512xbf16>, vector<512x256xbf16>, vector<16x256xf32> -> vector<16x256xf32>
    %c0_9 = arith.constant 0 : index
    %c0_10 = arith.constant 0 : index
    %12 = vector.load %arg8[%c0_9, %c0_10] : memref<1x256xf32, #tpu.memory_space<vmem>>, vector<1x256xf32>
    %13 = vector.broadcast %12 : vector<1x256xf32> to vector<16x256xf32>
    %14 = arith.addf %11, %13 : vector<16x256xf32>
    %cst_11 = arith.constant 0.000000e+00 : f32
    %15 = vector.broadcast %cst_11 : f32 to vector<16x256xf32>
    %16 = arith.maximumf %14, %15 : vector<16x256xf32>
    %17 = arith.truncf %16 : vector<16x256xf32> to vector<16x256xbf16>
    %c0_12 = arith.constant 0 : index
    %c0_13 = arith.constant 0 : index
    %18 = vector.load %arg4[%c0_12, %c0_13] : memref<256x128xbf16, #tpu.memory_space<vmem>>, vector<256x128xbf16>
    %cst_14 = arith.constant dense<0.000000e+00> : vector<16x128xf32>
    %19 = tpu.matmul %17, %18, %cst_14 {dimension_numbers = #tpu.dot_dimension_numbers<[1], [0], [0], [1], [0, 0, 1, 1], [], []>} : vector<16x256xbf16>, vector<256x128xbf16>, vector<16x128xf32> -> vector<16x128xf32>
    %c0_15 = arith.constant 0 : index
    %c0_16 = arith.constant 0 : index
    %20 = vector.load %arg9[%c0_15, %c0_16] : memref<1x128xf32, #tpu.memory_space<vmem>>, vector<1x128xf32>
    %21 = vector.broadcast %20 : vector<1x128xf32> to vector<16x128xf32>
    %22 = arith.addf %19, %21 : vector<16x128xf32>
    %cst_17 = arith.constant 0.000000e+00 : f32
    %23 = vector.broadcast %cst_17 : f32 to vector<16x128xf32>
    %24 = arith.maximumf %22, %23 : vector<16x128xf32>
    %25 = arith.truncf %24 : vector<16x128xf32> to vector<16x128xbf16>
    %c0_18 = arith.constant 0 : index
    %c0_19 = arith.constant 0 : index
    %26 = vector.load %arg5[%c0_18, %c0_19] : memref<128x128xbf16, #tpu.memory_space<vmem>>, vector<128x128xbf16>
    %cst_20 = arith.constant dense<0.000000e+00> : vector<16x128xf32>
    %27 = tpu.matmul %25, %26, %cst_20 {dimension_numbers = #tpu.dot_dimension_numbers<[1], [0], [0], [1], [0, 0, 1, 1], [], []>} : vector<16x128xbf16>, vector<128x128xbf16>, vector<16x128xf32> -> vector<16x128xf32>
    %c0_21 = arith.constant 0 : index
    %c0_22 = arith.constant 0 : index
    %28 = vector.load %arg10[%c0_21, %c0_22] : memref<1x128xf32, #tpu.memory_space<vmem>>, vector<1x128xf32>
    %29 = vector.broadcast %28 : vector<1x128xf32> to vector<16x128xf32>
    %30 = arith.addf %27, %29 : vector<16x128xf32>
    %cst_23 = arith.constant 0.000000e+00 : f32
    %31 = vector.broadcast %cst_23 : f32 to vector<16x128xf32>
    %32 = arith.maximumf %30, %31 : vector<16x128xf32>
    %33 = arith.truncf %32 : vector<16x128xf32> to vector<16x128xbf16>
    %c0_24 = arith.constant 0 : index
    %c0_25 = arith.constant 0 : index
    %34 = vector.load %arg6[%c0_24, %c0_25] : memref<128x128xbf16, #tpu.memory_space<vmem>>, vector<128x128xbf16>
    %cst_26 = arith.constant dense<0.000000e+00> : vector<16x128xf32>
    %35 = tpu.matmul %33, %34, %cst_26 {dimension_numbers = #tpu.dot_dimension_numbers<[1], [0], [0], [1], [0, 0, 1, 1], [], []>} : vector<16x128xbf16>, vector<128x128xbf16>, vector<16x128xf32> -> vector<16x128xf32>
    %c0_27 = arith.constant 0 : index
    %c0_28 = arith.constant 0 : index
    %36 = vector.load %arg11[%c0_27, %c0_28] : memref<1x128xf32, #tpu.memory_space<vmem>>, vector<1x128xf32>
    %37 = vector.broadcast %36 : vector<1x128xf32> to vector<16x128xf32>
    %38 = arith.addf %35, %37 : vector<16x128xf32>
    %39 = arith.truncf %38 : vector<16x128xf32> to vector<16x128xbf16>
    %c0_29 = arith.constant 0 : index
    %c0_30 = arith.constant 0 : index
    %40 = vector.load %arg12[%c0_29, %c0_30] : memref<16x128xbf16, #tpu.memory_space<vmem>>, vector<16x128xbf16>
    tpu.vector_store %arg12[%c0_29, %c0_30], %39 {strides = array<i32>} : memref<16x128xbf16, #tpu.memory_space<vmem>>, vector<16x128xbf16>,
    return
  }
  func.func @transform_0(%arg0: i32) -> (i32, i32) {
    %c0_i32 = arith.constant 0 : i32
    %c0_i32_0 = arith.constant 0 : i32
    return %arg0, %c0_i32 : i32, i32
  }
  func.func @transform_1(%arg0: i32) -> (i32, i32) {
    %c0_i32 = arith.constant 0 : i32
    %c0_i32_0 = arith.constant 0 : i32
    %c0_i32_1 = arith.constant 0 : i32
    return %c0_i32, %c0_i32_0 : i32, i32
  }
  func.func @transform_2(%arg0: i32) -> (i32, i32) {
    %c0_i32 = arith.constant 0 : i32
    %c0_i32_0 = arith.constant 0 : i32
    %c0_i32_1 = arith.constant 0 : i32
    return %c0_i32, %c0_i32_0 : i32, i32
  }
  func.func @transform_3(%arg0: i32) -> (i32, i32) {
    %c0_i32 = arith.constant 0 : i32
    %c0_i32_0 = arith.constant 0 : i32
    %c0_i32_1 = arith.constant 0 : i32
    return %c0_i32, %c0_i32_0 : i32, i32
  }
  func.func @transform_4(%arg0: i32) -> (i32, i32) {
    %c0_i32 = arith.constant 0 : i32
    %c0_i32_0 = arith.constant 0 : i32
    %c0_i32_1 = arith.constant 0 : i32
    return %c0_i32, %c0_i32_0 : i32, i32
  }
  func.func @transform_5(%arg0: i32) -> (i32, i32) {
    %c0_i32 = arith.constant 0 : i32
    %c0_i32_0 = arith.constant 0 : i32
    %c0_i32_1 = arith.constant 0 : i32
    return %c0_i32, %c0_i32_0 : i32, i32
  }
  func.func @transform_6(%arg0: i32) -> (i32, i32) {
    %c0_i32 = arith.constant 0 : i32
    %c0_i32_0 = arith.constant 0 : i32
    %c0_i32_1 = arith.constant 0 : i32
    return %c0_i32, %c0_i32_0 : i32, i32
  }
  func.func @transform_7(%arg0: i32) -> (i32, i32) {
    %c0_i32 = arith.constant 0 : i32
    %c0_i32_0 = arith.constant 0 : i32
    %c0_i32_1 = arith.constant 0 : i32
    return %c0_i32, %c0_i32_0 : i32, i32
  }
  func.func @transform_8(%arg0: i32) -> (i32, i32) {
    %c0_i32 = arith.constant 0 : i32
    %c0_i32_0 = arith.constant 0 : i32
    %c0_i32_1 = arith.constant 0 : i32
    return %c0_i32, %c0_i32_0 : i32, i32
  }
  func.func @transform_9(%arg0: i32) -> (i32, i32) {
    %c0_i32 = arith.constant 0 : i32
    %c0_i32_0 = arith.constant 0 : i32
    %c0_i32_1 = arith.constant 0 : i32
    return %c0_i32, %c0_i32_0 : i32, i32
  }
  func.func @transform_10(%arg0: i32) -> (i32, i32) {
    %c0_i32 = arith.constant 0 : i32
    %c0_i32_0 = arith.constant 0 : i32
    %c0_i32_1 = arith.constant 0 : i32
    return %c0_i32, %c0_i32_0 : i32, i32
  }
  func.func @transform_11(%arg0: i32) -> (i32, i32) {
    %c0_i32 = arith.constant 0 : i32
    %c0_i32_0 = arith.constant 0 : i32
    return %arg0, %c0_i32 : i32, i32
  }
}

</mosaic_0001>

<llo_original>
// kernel: _net_forward_prepared.1
$region0: #{_net_forward_prepared.1}
  #allocation0 [shape = 'u32[]', space=smem, size = 0x4, offset = 0x4, fixed_abs, tag = 'smem constant byte address 0x4 - core index']
  #allocation1 [shape = 'u32[144,128]{1,0:T(1,128)}', space=vmem, size = 0x12000, scoped, tag = 'internal scratch']
  %s0 = inlined_call_operand.vmem [shape: f32[16,784], index: 0, kind: input, shape index: {}]
  %s1 = inlined_call_operand.hbm [shape: bf16[784,512], index: 1, kind: input, shape index: {}]
  %s2 = inlined_call_operand.hbm [shape: bf16[512,256], index: 2, kind: input, shape index: {}]
  %s3 = inlined_call_operand.vmem [shape: bf16[256,128], index: 3, kind: input, shape index: {}]
  %s4 = inlined_call_operand.hbm [shape: bf16[128,128], index: 4, kind: input, shape index: {}]
  %s5 = inlined_call_operand.hbm [shape: bf16[128,128], index: 5, kind: input, shape index: {}]
  %s6 = inlined_call_operand.vmem [shape: f32[1,512], index: 6, kind: input, shape index: {}]
  %s7 = inlined_call_operand.vmem [shape: f32[1,256], index: 7, kind: input, shape index: {}]
  %s8 = inlined_call_operand.vmem [shape: f32[1,128], index: 8, kind: input, shape index: {}]
  %s9 = inlined_call_operand.vmem [shape: f32[1,128], index: 9, kind: input, shape index: {}]
  %s10 = inlined_call_operand.vmem [shape: f32[1,128], index: 10, kind: input, shape index: {}]
  %s11 = inlined_call_operand.vmem [shape: bf16[16,128], index: 11, kind: output, shape index: {}]
  %s12 = sld [smem:[#allocation0]]
  $region70: #{_net_forward_prepared.1} parent=0
    _
  %s14 = ssub.s32 1, %s12
  %s15 = scalar_select 0, %s14, %s12
  $region1: #{_net_forward_prepared.1} parent=0
    #allocation2 [shape = 'u8[802816]{0}', space=vmem, size = 0xc4000, scoped, tag = 'input window, operand 1, single buffered']
    #allocation3 [shape = 's32[1]{0}', space=sflag, size = 0x4, scoped, tag = 'scoped memory for _net_forward_prepared.1']
    #allocation4 [shape = 'u8[262144]{0}', space=vmem, size = 0x40000, scoped, tag = 'input window, operand 2, single buffered']
    #allocation5 [shape = 's32[1]{0}', space=sflag, size = 0x4, scoped, tag = 'scoped memory for _net_forward_prepared.1']
    #allocation6 [shape = 'u8[32768]{0}', space=vmem, size = 0x8000, scoped, tag = 'input window, operand 4, single buffered']
    #allocation7 [shape = 'u8[32768]{0}', space=vmem, size = 0x8000, scoped, tag = 'input window, operand 5, single buffered']
    #allocation8 [shape = 's32[1]{0}', space=sflag, size = 0x4, scoped, tag = 'scoped memory for _net_forward_prepared.1']
    %16 = vsyncpa [#allocation3], 0
    %17 = vsyncpa [#allocation5], 0
    %18 = vsyncpa [#allocation8], 0
    // Predicated region
    $region2: #{_net_forward_prepared.1} parent=1 // pred_check
      _
    $region3: #{_net_forward_prepared.1} parent=1 // pred_check_branch
      %20 = sbr.rel (0) target = $region5
    $region4: #{_net_forward_prepared.1} parent=1 // pred_region
      _
    $region5: #{_net_forward_prepared.1} parent=1 // pred_fallthru
      _
    // Predicated region
    $region6: #{_net_forward_prepared.1} parent=1 // pred_check
      _
    $region7: #{_net_forward_prepared.1} parent=1 // pred_check_branch
      %22 = sbr.rel (0) target = $region9
    $region8: #{_net_forward_prepared.1} parent=1 // pred_region
      %s24 = ssub.s32 25088, 25088
      %25 = vsyncadd [#allocation3], %s24
      %s26 = sshll.u32 [#allocation2], 4
      %s27 = int_to_ptr.vmem [resolvable:$true] %s26
      %32 = dma.hbm_to_vmem [thread:$0]  %s1, 25088, %s27, [#allocation3], 256, 256, 16
    $region9: #{_net_forward_prepared.1} parent=1 // pred_fallthru
      _
    // Predicated region
    $region10: #{_net_forward_prepared.1} parent=1 // pred_check
      _
    $region11: #{_net_forward_prepared.1} parent=1 // pred_check_branch
      %34 = sbr.rel (0) target = $region13
    $region12: #{_net_forward_prepared.1} parent=1 // pred_region
      %s36 = ssub.s32 8192, 8192
      %37 = vsyncadd [#allocation5], %s36
      %s38 = sshll.u32 [#allocation4], 4
      %s39 = int_to_ptr.vmem [resolvable:$true] %s38
      %44 = dma.hbm_to_vmem [thread:$0]  %s2, 8192, %s39, [#allocation5], 128, 128, 8
    $region13: #{_net_forward_prepared.1} parent=1 // pred_fallthru
      _
    // Predicated region
    $region14: #{_net_forward_prepared.1} parent=1 // pred_check
      _
    $region15: #{_net_forward_prepared.1} parent=1 // pred_check_branch
      %46 = sbr.rel (0) target = $region17
    $region16: #{_net_forward_prepared.1} parent=1 // pred_region
      _
    $region17: #{_net_forward_prepared.1} parent=1 // pred_fallthru
      _
    // Predicated region
    $region18: #{_net_forward_prepared.1} parent=1 // pred_check
      _
    $region19: #{_net_forward_prepared.1} parent=1 // pred_check_branch
      %48 = sbr.rel (0) target = $region21
    $region20: #{_net_forward_prepared.1} parent=1 // pred_region
      %s50 = ssub.s32 1024, 1024
      %51 = vsyncadd [#allocation5], %s50
      %s52 = sshll.u32 [#allocation6], 4
      %s53 = int_to_ptr.vmem [resolvable:$true] %s52
      %58 = dma.hbm_to_vmem [thread:$0]  %s4, 1024, %s53, [#allocation5], 64, 64, 4
    $region21: #{_net_forward_prepared.1} parent=1 // pred_fallthru
      _
    // Predicated region
    $region22: #{_net_forward_prepared.1} parent=1 // pred_check
      _
    $region23: #{_net_forward_prepared.1} parent=1 // pred_check_branch
      %60 = sbr.rel (0) target = $region25
    $region24: #{_net_forward_prepared.1} parent=1 // pred_region
      %s62 = ssub.s32 1024, 1024
      %63 = vsyncadd [#allocation8], %s62
      %s64 = sshll.u32 [#allocation7], 4
      %s65 = int_to_ptr.vmem [resolvable:$true] %s64
      %70 = dma.hbm_to_vmem [thread:$0]  %s5, 1024, %s65, [#allocation8], 64, 64, 4
    $region25: #{_net_forward_prepared.1} parent=1 // pred_fallthru
      _
    // Predicated region
    $region26: #{_net_forward_prepared.1} parent=1 // pred_check
      _
    $region27: #{_net_forward_prepared.1} parent=1 // pred_check_branch
      %72 = sbr.rel (0) target = $region29
    $region28: #{_net_forward_prepared.1} parent=1 // pred_region
      _
    $region29: #{_net_forward_prepared.1} parent=1 // pred_fallthru
      _
    // Predicated region
    $region30: #{_net_forward_prepared.1} parent=1 // pred_check
      _
    $region31: #{_net_forward_prepared.1} parent=1 // pred_check_branch
      %74 = sbr.rel (0) target = $region33
    $region32: #{_net_forward_prepared.1} parent=1 // pred_region
      _
    $region33: #{_net_forward_prepared.1} parent=1 // pred_fallthru
      _
    // Predicated region
    $region34: #{_net_forward_prepared.1} parent=1 // pred_check
      _
    $region35: #{_net_forward_prepared.1} parent=1 // pred_check_branch
      %76 = sbr.rel (0) target = $region37
    $region36: #{_net_forward_prepared.1} parent=1 // pred_region
      _
    $region37: #{_net_forward_prepared.1} parent=1 // pred_fallthru
      _
    // Predicated region
    $region38: #{_net_forward_prepared.1} parent=1 // pred_check
      _
    $region39: #{_net_forward_prepared.1} parent=1 // pred_check_branch
      %78 = sbr.rel (0) target = $region41
    $region40: #{_net_forward_prepared.1} parent=1 // pred_region
      _
    $region41: #{_net_forward_prepared.1} parent=1 // pred_fallthru
      _
    // Predicated region
    $region42: #{_net_forward_prepared.1} parent=1 // pred_check
      _
    $region43: #{_net_forward_prepared.1} parent=1 // pred_check_branch
      %80 = sbr.rel (0) target = $region45
    $region44: #{_net_forward_prepared.1} parent=1 // pred_region
      _
    $region45: #{_net_forward_prepared.1} parent=1 // pred_fallthru
      _
    // Predicated region
    $region46: #{_net_forward_prepared.1} parent=1 // pred_check
      _
    $region47: #{_net_forward_prepared.1} parent=1 // pred_check_branch
      %82 = sbr.rel (0) target = $region49
    $region48: #{_net_forward_prepared.1} parent=1 // pred_region
      %83 = dma.done [#allocation3], 25088
    $region49: #{_net_forward_prepared.1} parent=1 // pred_fallthru
      _
    // Predicated region
    $region50: #{_net_forward_prepared.1} parent=1 // pred_check
      _
    $region51: #{_net_forward_prepared.1} parent=1 // pred_check_branch
      %85 = sbr.rel (0) target = $region53
    $region52: #{_net_forward_prepared.1} parent=1 // pred_region
      %86 = dma.done [#allocation5], 8192
    $region53: #{_net_forward_prepared.1} parent=1 // pred_fallthru
      _
    // Predicated region
    $region54: #{_net_forward_prepared.1} parent=1 // pred_check
      _
    $region55: #{_net_forward_prepared.1} parent=1 // pred_check_branch
      %88 = sbr.rel (0) target = $region57
    $region56: #{_net_forward_prepared.1} parent=1 // pred_region
      %89 = dma.done [#allocation5], 1024
    $region57: #{_net_forward_prepared.1} parent=1 // pred_fallthru
      _
    // Predicated region
    $region58: #{_net_forward_prepared.1} parent=1 // pred_check
      _
    $region59: #{_net_forward_prepared.1} parent=1 // pred_check_branch
      %91 = sbr.rel (0) target = $region61
    $region60: #{_net_forward_prepared.1} parent=1 // pred_region
      %92 = dma.done [#allocation8], 1024
    $region61: #{_net_forward_prepared.1} parent=1 // pred_fallthru
      _
    %v94 = vld [vmem:[%s0] sm:$0xff]
    %v95 = vld [vmem:[%s0 + $0x8] sm:$0xff]
    %v96 = vld [vmem:[%s0 + $0x10] sm:$0xff]
    %v97 = vld [vmem:[%s0 + $0x18] sm:$0xff]
    %v98 = vld [vmem:[%s0 + $0x20] sm:$0xff]
    %v99 = vld [vmem:[%s0 + $0x28] sm:$0xff]
    %v100 = vld [vmem:[%s0 + $0x30] sm:$0xff]
    %v101 = vld [vmem:[%s0 + $0x38] sm:$0xff]
    %v102 = vld [vmem:[%s0 + $0x40] sm:$0xff]
    %v103 = vld [vmem:[%s0 + $0x48] sm:$0xff]
    %v104 = vld [vmem:[%s0 + $0x50] sm:$0xff]
    %v105 = vld [vmem:[%s0 + $0x58] sm:$0xff]
    %v106 = vld [vmem:[%s0 + $0x60] sm:$0xff]
    %v107 = vld [vmem:[%s0 + $0x68] sm:$0xff]
    %v108 = vpack.c.bf16 %v101, %v94
    %v109 = vpack.c.bf16 %v102, %v95
    %v110 = vpack.c.bf16 %v103, %v96
    %v111 = vpack.c.bf16 %v104, %v97
    %v112 = vpack.c.bf16 %v105, %v98
    %v113 = vpack.c.bf16 %v106, %v99
    %v114 = vpack.c.bf16 %v107, %v100
    %v115 = vld [vmem:[#allocation2] sm:$0xff]
    %v116 = vld [vmem:[#allocation2 + $0x8] sm:$0xff]
    %v117 = vld [vmem:[#allocation2 + $0x10] sm:$0xff]
    %v118 = vld [vmem:[#allocation2 + $0x18] sm:$0xff]
    %v119 = vld [vmem:[#allocation2 + $0x20] sm:$0xff]
    %v120 = vld [vmem:[#allocation2 + $0x28] sm:$0xff]
    %v121 = vld [vmem:[#allocation2 + $0x30] sm:$0xff]
    %v122 = vld [vmem:[#allocation2 + $0x38] sm:$0xff]
    %v123 = vld [vmem:[#allocation2 + $0x40] sm:$0xff]
    %v124 = vld [vmem:[#allocation2 + $0x48] sm:$0xff]
    %v125 = vld [vmem:[#allocation2 + $0x50] sm:$0xff]
    %v126 = vld [vmem:[#allocation2 + $0x58] sm:$0xff]
    %v127 = vld [vmem:[#allocation2 + $0x60] sm:$0xff]
    %v128 = vld [vmem:[#allocation2 + $0x68] sm:$0xff]
    %v129 = vld [vmem:[#allocation2 + $0x70] sm:$0xff]
    %v130 = vld [vmem:[#allocation2 + $0x78] sm:$0xff]
    %v131 = vld [vmem:[#allocation2 + $0x80] sm:$0xff]
    %v132 = vld [vmem:[#allocation2 + $0x88] sm:$0xff]
    %v133 = vld [vmem:[#allocation2 + $0x90] sm:$0xff]
    %v134 = vld [vmem:[#allocation2 + $0x98] sm:$0xff]
    %v135 = vld [vmem:[#allocation2 + $0xa0] sm:$0xff]
    %v136 = vld [vmem:[#allocation2 + $0xa8] sm:$0xff]
    %v137 = vld [vmem:[#allocation2 + $0xb0] sm:$0xff]
    %v138 = vld [vmem:[#allocation2 + $0xb8] sm:$0xff]
    %v139 = vld [vmem:[#allocation2 + $0xc0] sm:$0xff]
    %v140 = vld [vmem:[#allocation2 + $0xc8] sm:$0xff]
    %v141 = vld [vmem:[#allocation2 + $0xd0] sm:$0xff]
    %v142 = vld [vmem:[#allocation2 + $0xd8] sm:$0xff]
    %v143 = vld [vmem:[#allocation2 + $0xe0] sm:$0xff]
    %v144 = vld [vmem:[#allocation2 + $0xe8] sm:$0xff]
    %v145 = vld [vmem:[#allocation2 + $0xf0] sm:$0xff]
    %v146 = vld [vmem:[#allocation2 + $0xf8] sm:$0xff]
    %v147 = vld [vmem:[#allocation2 + $0x100] sm:$0xff]
    %v148 = vld [vmem:[#allocation2 + $0x108] sm:$0xff]
    %v149 = vld [vmem:[#allocation2 + $0x110] sm:$0xff]
    %v150 = vld [vmem:[#allocation2 + $0x118] sm:$0xff]
    %v151 = vld [vmem:[#allocation2 + $0x120] sm:$0xff]
    %v152 = vld [vmem:[#allocation2 + $0x128] sm:$0xff]
    %v153 = vld [vmem:[#allocation2 + $0x130] sm:$0xff]
    %v154 = vld [vmem:[#allocation2 + $0x138] sm:$0xff]
    %v155 = vld [vmem:[#allocation2 + $0x140] sm:$0xff]
    %v156 = vld [vmem:[#allocation2 + $0x148] sm:$0xff]
    %v157 = vld [vmem:[#allocation2 + $0x150] sm:$0xff]
    %v158 = vld [vmem:[#allocation2 + $0x158] sm:$0xff]
    %v159 = vld [vmem:[#allocation2 + $0x160] sm:$0xff]
    %v160 = vld [vmem:[#allocation2 + $0x168] sm:$0xff]
    %v161 = vld [vmem:[#allocation2 + $0x170] sm:$0xff]
    %v162 = vld [vmem:[#allocation2 + $0x178] sm:$0xff]
    %v163 = vld [vmem:[#allocation2 + $0x180] sm:$0xff]
    %v164 = vld [vmem:[#allocation2 + $0x188] sm:$0xff]
    %v165 = vld [vmem:[#allocation2 + $0x190] sm:$0xff]
    %v166 = vld [vmem:[#allocation2 + $0x198] sm:$0xff]
    %v167 = vld [vmem:[#allocation2 + $0x1a0] sm:$0xff]
    %v168 = vld [vmem:[#allocation2 + $0x1a8] sm:$0xff]
    %v169 = vld [vmem:[#allocation2 + $0x1b0] sm:$0xff]
    %v170 = vld [vmem:[#allocation2 + $0x1b8] sm:$0xff]
    %v171 = vld [vmem:[#allocation2 + $0x1c0] sm:$0xff]
    %v172 = vld [vmem:[#allocation2 + $0x1c8] sm:$0xff]
    %v173 = vld [vmem:[#allocation2 + $0x1d0] sm:$0xff]
    %v174 = vld [vmem:[#allocation2 + $0x1d8] sm:$0xff]
    %v175 = vld [vmem:[#allocation2 + $0x1e0] sm:$0xff]
    %v176 = vld [vmem:[#allocation2 + $0x1e8] sm:$0xff]
    %v177 = vld [vmem:[#allocation2 + $0x1f0] sm:$0xff]
    %v178 = vld [vmem:[#allocation2 + $0x1f8] sm:$0xff]
    %v179 = vld [vmem:[#allocation2 + $0x200] sm:$0xff]
    %v180 = vld [vmem:[#allocation2 + $0x208] sm:$0xff]
    %v181 = vld [vmem:[#allocation2 + $0x210] sm:$0xff]
    %v182 = vld [vmem:[#allocation2 + $0x218] sm:$0xff]
    %v183 = vld [vmem:[#allocation2 + $0x220] sm:$0xff]
    %v184 = vld [vmem:[#allocation2 + $0x228] sm:$0xff]
    %v185 = vld [vmem:[#allocation2 + $0x230] sm:$0xff]
    %v186 = vld [vmem:[#allocation2 + $0x238] sm:$0xff]
    %v187 = vld [vmem:[#allocation2 + $0x240] sm:$0xff]
    %v188 = vld [vmem:[#allocation2 + $0x248] sm:$0xff]
    %v189 = vld [vmem:[#allocation2 + $0x250] sm:$0xff]
    %v190 = vld [vmem:[#allocation2 + $0x258] sm:$0xff]
    %v191 = vld [vmem:[#allocation2 + $0x260] sm:$0xff]
    %v192 = vld [vmem:[#allocation2 + $0x268] sm:$0xff]
    %v193 = vld [vmem:[#allocation2 + $0x270] sm:$0xff]
    %v194 = vld [vmem:[#allocation2 + $0x278] sm:$0xff]
    %v195 = vld [vmem:[#allocation2 + $0x280] sm:$0xff]
    %v196 = vld [vmem:[#allocation2 + $0x288] sm:$0xff]
    %v197 = vld [vmem:[#allocation2 + $0x290] sm:$0xff]
    %v198 = vld [vmem:[#allocation2 + $0x298] sm:$0xff]
    %v199 = vld [vmem:[#allocation2 + $0x2a0] sm:$0xff]
    %v200 = vld [vmem:[#allocation2 + $0x2a8] sm:$0xff]
    %v201 = vld [vmem:[#allocation2 + $0x2b0] sm:$0xff]
    %v202 = vld [vmem:[#allocation2 + $0x2b8] sm:$0xff]
    %v203 = vld [vmem:[#allocation2 + $0x2c0] sm:$0xff]
    %v204 = vld [vmem:[#allocation2 + $0x2c8] sm:$0xff]
    %v205 = vld [vmem:[#allocation2 + $0x2d0] sm:$0xff]
    %v206 = vld [vmem:[#allocation2 + $0x2d8] sm:$0xff]
    %v207 = vld [vmem:[#allocation2 + $0x2e0] sm:$0xff]
    %v208 = vld [vmem:[#allocation2 + $0x2e8] sm:$0xff]
    %v209 = vld [vmem:[#allocation2 + $0x2f0] sm:$0xff]
    %v210 = vld [vmem:[#allocation2 + $0x2f8] sm:$0xff]
    %v211 = vld [vmem:[#allocation2 + $0x300] sm:$0xff]
    %v212 = vld [vmem:[#allocation2 + $0x308] sm:$0xff]
    %v213 = vld [vmem:[#allocation2 + $0x310] sm:$0xff]
    %v214 = vld [vmem:[#allocation2 + $0x318] sm:$0xff]
    %v215 = vld [vmem:[#allocation2 + $0x320] sm:$0xff]
    %v216 = vld [vmem:[#allocation2 + $0x328] sm:$0xff]
    %v217 = vld [vmem:[#allocation2 + $0x330] sm:$0xff]
    %v218 = vld [vmem:[#allocation2 + $0x338] sm:$0xff]
    %v219 = vld [vmem:[#allocation2 + $0x340] sm:$0xff]
    %v220 = vld [vmem:[#allocation2 + $0x348] sm:$0xff]
    %v221 = vld [vmem:[#allocation2 + $0x350] sm:$0xff]
    %v222 = vld [vmem:[#allocation2 + $0x358] sm:$0xff]
    %v223 = vld [vmem:[#allocation2 + $0x360] sm:$0xff]
    %v224 = vld [vmem:[#allocation2 + $0x368] sm:$0xff]
    %v225 = vld [vmem:[#allocation2 + $0x370] sm:$0xff]
    %v226 = vld [vmem:[#allocation2 + $0x378] sm:$0xff]
    %v227 = vld [vmem:[#allocation2 + $0x380] sm:$0xff]
    %v228 = vld [vmem:[#allocation2 + $0x388] sm:$0xff]
    %v229 = vld [vmem:[#allocation2 + $0x390] sm:$0xff]
    %v230 = vld [vmem:[#allocation2 + $0x398] sm:$0xff]
    %v231 = vld [vmem:[#allocation2 + $0x3a0] sm:$0xff]
    %v232 = vld [vmem:[#allocation2 + $0x3a8] sm:$0xff]
    %v233 = vld [vmem:[#allocation2 + $0x3b0] sm:$0xff]
    %v234 = vld [vmem:[#allocation2 + $0x3b8] sm:$0xff]
    %v235 = vld [vmem:[#allocation2 + $0x3c0] sm:$0xff]
    %v236 = vld [vmem:[#allocation2 + $0x3c8] sm:$0xff]
    %v237 = vld [vmem:[#allocation2 + $0x3d0] sm:$0xff]
    %v238 = vld [vmem:[#allocation2 + $0x3d8] sm:$0xff]
    %v239 = vld [vmem:[#allocation2 + $0x3e0] sm:$0xff]
    %v240 = vld [vmem:[#allocation2 + $0x3e8] sm:$0xff]
    %v241 = vld [vmem:[#allocation2 + $0x3f0] sm:$0xff]
    %v242 = vld [vmem:[#allocation2 + $0x3f8] sm:$0xff]
    %v243 = vld [vmem:[#allocation2 + $0x400] sm:$0xff]
    %v244 = vld [vmem:[#allocation2 + $0x408] sm:$0xff]
    %v245 = vld [vmem:[#allocation2 + $0x410] sm:$0xff]
    %v246 = vld [vmem:[#allocation2 + $0x418] sm:$0xff]
    %v247 = vld [vmem:[#allocation2 + $0x420] sm:$0xff]
    %v248 = vld [vmem:[#allocation2 + $0x428] sm:$0xff]
    %v249 = vld [vmem:[#allocation2 + $0x430] sm:$0xff]
    %v250 = vld [vmem:[#allocation2 + $0x438] sm:$0xff]
    %v251 = vld [vmem:[#allocation2 + $0x440] sm:$0xff]
    %v252 = vld [vmem:[#allocation2 + $0x448] sm:$0xff]
    %v253 = vld [vmem:[#allocation2 + $0x450] sm:$0xff]
    %v254 = vld [vmem:[#allocation2 + $0x458] sm:$0xff]
    %v255 = vld [vmem:[#allocation2 + $0x460] sm:$0xff]
    %v256 = vld [vmem:[#allocation2 + $0x468] sm:$0xff]
    %v257 = vld [vmem:[#allocation2 + $0x470] sm:$0xff]
    %v258 = vld [vmem:[#allocation2 + $0x478] sm:$0xff]
    %v259 = vld [vmem:[#allocation2 + $0x480] sm:$0xff]
    %v260 = vld [vmem:[#allocation2 + $0x488] sm:$0xff]
    %v261 = vld [vmem:[#allocation2 + $0x490] sm:$0xff]
    %v262 = vld [vmem:[#allocation2 + $0x498] sm:$0xff]
    %v263 = vld [vmem:[#allocation2 + $0x4a0] sm:$0xff]
    %v264 = vld [vmem:[#allocation2 + $0x4a8] sm:$0xff]
    %v265 = vld [vmem:[#allocation2 + $0x4b0] sm:$0xff]
    %v266 = vld [vmem:[#allocation2 + $0x4b8] sm:$0xff]
    %v267 = vld [vmem:[#allocation2 + $0x4c0] sm:$0xff]
    %v268 = vld [vmem:[#allocation2 + $0x4c8] sm:$0xff]
    %v269 = vld [vmem:[#allocation2 + $0x4d0] sm:$0xff]
    %v270 = vld [vmem:[#allocation2 + $0x4d8] sm:$0xff]
    %v271 = vld [vmem:[#allocation2 + $0x4e0] sm:$0xff]
    %v272 = vld [vmem:[#allocation2 + $0x4e8] sm:$0xff]
    %v273 = vld [vmem:[#allocation2 + $0x4f0] sm:$0xff]
    %v274 = vld [vmem:[#allocation2 + $0x4f8] sm:$0xff]
    %v275 = vld [vmem:[#allocation2 + $0x500] sm:$0xff]
    %v276 = vld [vmem:[#allocation2 + $0x508] sm:$0xff]
    %v277 = vld [vmem:[#allocation2 + $0x510] sm:$0xff]
    %v278 = vld [vmem:[#allocation2 + $0x518] sm:$0xff]
    %v279 = vld [vmem:[#allocation2 + $0x520] sm:$0xff]
    %v280 = vld [vmem:[#allocation2 + $0x528] sm:$0xff]
    %v281 = vld [vmem:[#allocation2 + $0x530] sm:$0xff]
    %v282 = vld [vmem:[#allocation2 + $0x538] sm:$0xff]
    %v283 = vld [vmem:[#allocation2 + $0x540] sm:$0xff]
    %v284 = vld [vmem:[#allocation2 + $0x548] sm:$0xff]
    %v285 = vld [vmem:[#allocation2 + $0x550] sm:$0xff]
    %v286 = vld [vmem:[#allocation2 + $0x558] sm:$0xff]
    %v287 = vld [vmem:[#allocation2 + $0x560] sm:$0xff]
    %v288 = vld [vmem:[#allocation2 + $0x568] sm:$0xff]
    %v289 = vld [vmem:[#allocation2 + $0x570] sm:$0xff]
    %v290 = vld [vmem:[#allocation2 + $0x578] sm:$0xff]
    %v291 = vld [vmem:[#allocation2 + $0x580] sm:$0xff]
    %v292 = vld [vmem:[#allocation2 + $0x588] sm:$0xff]
    %v293 = vld [vmem:[#allocation2 + $0x590] sm:$0xff]
    %v294 = vld [vmem:[#allocation2 + $0x598] sm:$0xff]
    %v295 = vld [vmem:[#allocation2 + $0x5a0] sm:$0xff]
    %v296 = vld [vmem:[#allocation2 + $0x5a8] sm:$0xff]
    %v297 = vld [vmem:[#allocation2 + $0x5b0] sm:$0xff]
    %v298 = vld [vmem:[#allocation2 + $0x5b8] sm:$0xff]
    %v299 = vld [vmem:[#allocation2 + $0x5c0] sm:$0xff]
    %v300 = vld [vmem:[#allocation2 + $0x5c8] sm:$0xff]
    %v301 = vld [vmem:[#allocation2 + $0x5d0] sm:$0xff]
    %v302 = vld [vmem:[#allocation2 + $0x5d8] sm:$0xff]
    %v303 = vld [vmem:[#allocation2 + $0x5e0] sm:$0xff]
    %v304 = vld [vmem:[#allocation2 + $0x5e8] sm:$0xff]
    %v305 = vld [vmem:[#allocation2 + $0x5f0] sm:$0xff]
    %v306 = vld [vmem:[#allocation2 + $0x5f8] sm:$0xff]
    %v307 = vld [vmem:[#allocation2 + $0x600] sm:$0xff]
    %v308 = vld [vmem:[#allocation2 + $0x608] sm:$0xff]
    %v309 = vld [vmem:[#allocation2 + $0x610] sm:$0xff]
    %v310 = vld [vmem:[#allocation2 + $0x618] sm:$0xff]
    %v311 = vld [vmem:[%s6] sm:$0xf]
    %v313 = vlaneseq
    %v314 = vshrl.u32 %v313, 7
    %v315 = vsub.s32 0, %v314
    %v316 = vrot.slane %v311, %v315
    %v317 = vlaneseq
    %v318 = vshrl.u32 %v317, 7
    %v319 = vsub.s32 1, %v318
    %v320 = vrot.slane %v311, %v319
    %v321 = vlaneseq
    %v322 = vshrl.u32 %v321, 7
    %v323 = vsub.s32 2, %v322
    %v324 = vrot.slane %v311, %v323
    %v325 = vlaneseq
    %v326 = vshrl.u32 %v325, 7
    %v327 = vsub.s32 3, %v326
    %v328 = vrot.slane %v311, %v327
    %v529 = vunpack.c.l.b16 %v115
    %v530 = vunpack.c.h.b16 %v115
    %v531 = vunpack.c.l.b16 %v116
    %v532 = vunpack.c.h.b16 %v116
    %v533 = vunpack.c.l.b16 %v117
    %v534 = vunpack.c.h.b16 %v117
    %v535 = vunpack.c.l.b16 %v118
    %v536 = vunpack.c.h.b16 %v118
    %v537 = vunpack.c.l.b16 %v119
    %v538 = vunpack.c.h.b16 %v119
    %v539 = vunpack.c.l.b16 %v120
    %v540 = vunpack.c.h.b16 %v120
    %v541 = vunpack.c.l.b16 %v121
    %v542 = vunpack.c.h.b16 %v121
    %v543 = vunpack.c.l.b16 %v122
    %v544 = vunpack.c.h.b16 %v122
    %v545 = vunpack.c.l.b16 %v123
    %v546 = vunpack.c.h.b16 %v123
    %v547 = vunpack.c.l.b16 %v124
    %v548 = vunpack.c.h.b16 %v124
    %v549 = vunpack.c.l.b16 %v125
    %v550 = vunpack.c.h.b16 %v125
    %v551 = vunpack.c.l.b16 %v126
    %v552 = vunpack.c.h.b16 %v126
    %v553 = vunpack.c.l.b16 %v127
    %v554 = vunpack.c.h.b16 %v127
    %v555 = vunpack.c.l.b16 %v128
    %v556 = vunpack.c.h.b16 %v128
    %v557 = vunpack.c.l.b16 %v129
    %v558 = vunpack.c.h.b16 %v129
    %v559 = vunpack.c.l.b16 %v130
    %v560 = vunpack.c.h.b16 %v130
    %v561 = vunpack.c.l.b16 %v131
    %v562 = vunpack.c.h.b16 %v131
    %v563 = vunpack.c.l.b16 %v132
    %v564 = vunpack.c.h.b16 %v132
    %v565 = vunpack.c.l.b16 %v133
    %v566 = vunpack.c.h.b16 %v133
    %v567 = vunpack.c.l.b16 %v134
    %v568 = vunpack.c.h.b16 %v134
    %v569 = vunpack.c.l.b16 %v135
    %v570 = vunpack.c.h.b16 %v135
    %v571 = vunpack.c.l.b16 %v136
    %v572 = vunpack.c.h.b16 %v136
    %v573 = vunpack.c.l.b16 %v137
    %v574 = vunpack.c.h.b16 %v137
    %v575 = vunpack.c.l.b16 %v138
    %v576 = vunpack.c.h.b16 %v138
    %v577 = vunpack.c.l.b16 %v139
    %v578 = vunpack.c.h.b16 %v139
    %v579 = vunpack.c.l.b16 %v140
    %v580 = vunpack.c.h.b16 %v140
    %v581 = vunpack.c.l.b16 %v141
    %v582 = vunpack.c.h.b16 %v141
    %v583 = vunpack.c.l.b16 %v142
    %v584 = vunpack.c.h.b16 %v142
    %v585 = vunpack.c.l.b16 %v143
    %v586 = vunpack.c.h.b16 %v143
    %v587 = vunpack.c.l.b16 %v144
    %v588 = vunpack.c.h.b16 %v144
    %v589 = vunpack.c.l.b16 %v145
    %v590 = vunpack.c.h.b16 %v145
    %v591 = vunpack.c.l.b16 %v146
    %v592 = vunpack.c.h.b16 %v146
    %v593 = vunpack.c.l.b16 %v147
    %v594 = vunpack.c.h.b16 %v147
    %v595 = vunpack.c.l.b16 %v148
    %v596 = vunpack.c.h.b16 %v148
    %v597 = vunpack.c.l.b16 %v149
    %v598 = vunpack.c.h.b16 %v149
    %v599 = vunpack.c.l.b16 %v150
    %v600 = vunpack.c.h.b16 %v150
    %v601 = vunpack.c.l.b16 %v151
    %v602 = vunpack.c.h.b16 %v151
    %v603 = vunpack.c.l.b16 %v152
    %v604 = vunpack.c.h.b16 %v152
    %v605 = vunpack.c.l.b16 %v153
    %v606 = vunpack.c.h.b16 %v153
    %v607 = vunpack.c.l.b16 %v154
    %v608 = vunpack.c.h.b16 %v154
    %v609 = vunpack.c.l.b16 %v155
    %v610 = vunpack.c.h.b16 %v155
    %v611 = vunpack.c.l.b16 %v156
    %v612 = vunpack.c.h.b16 %v156
    %v613 = vunpack.c.l.b16 %v157
    %v614 = vunpack.c.h.b16 %v157
    %v615 = vunpack.c.l.b16 %v158
    %v616 = vunpack.c.h.b16 %v158
    %v617 = vunpack.c.l.b16 %v159
    %v618 = vunpack.c.h.b16 %v159
    %v619 = vunpack.c.l.b16 %v160
    %v620 = vunpack.c.h.b16 %v160
    %v621 = vunpack.c.l.b16 %v161
    %v622 = vunpack.c.h.b16 %v161
    %v623 = vunpack.c.l.b16 %v162
    %v624 = vunpack.c.h.b16 %v162
    %v625 = vunpack.c.l.b16 %v163
    %v626 = vunpack.c.h.b16 %v163
    %v627 = vunpack.c.l.b16 %v164
    %v628 = vunpack.c.h.b16 %v164
    %v629 = vunpack.c.l.b16 %v165
    %v630 = vunpack.c.h.b16 %v165
    %v631 = vunpack.c.l.b16 %v166
    %v632 = vunpack.c.h.b16 %v166
    %v633 = vunpack.c.l.b16 %v167
    %v634 = vunpack.c.h.b16 %v167
    %v635 = vunpack.c.l.b16 %v168
    %v636 = vunpack.c.h.b16 %v168
    %v637 = vunpack.c.l.b16 %v169
    %v638 = vunpack.c.h.b16 %v169
    %v639 = vunpack.c.l.b16 %v170
    %v640 = vunpack.c.h.b16 %v170
    %v641 = vunpack.c.l.b16 %v171
    %v642 = vunpack.c.h.b16 %v171
    %v643 = vunpack.c.l.b16 %v172
    %v644 = vunpack.c.h.b16 %v172
    %v645 = vunpack.c.l.b16 %v173
    %v646 = vunpack.c.h.b16 %v173
    %v647 = vunpack.c.l.b16 %v174
    %v648 = vunpack.c.h.b16 %v174
    %v649 = vunpack.c.l.b16 %v175
    %v650 = vunpack.c.h.b16 %v175
    %v651 = vunpack.c.l.b16 %v176
    %v652 = vunpack.c.h.b16 %v176
    %v653 = vunpack.c.l.b16 %v177
    %v654 = vunpack.c.h.b16 %v177
    %v655 = vunpack.c.l.b16 %v178
    %v656 = vunpack.c.h.b16 %v178
    %v657 = vunpack.c.l.b16 %v179
    %v658 = vunpack.c.h.b16 %v179
    %v659 = vunpack.c.l.b16 %v180
    %v660 = vunpack.c.h.b16 %v180
    %v661 = vunpack.c.l.b16 %v181
    %v662 = vunpack.c.h.b16 %v181
    %v663 = vunpack.c.l.b16 %v182
    %v664 = vunpack.c.h.b16 %v182
    %v665 = vunpack.c.l.b16 %v183
    %v666 = vunpack.c.h.b16 %v183
    %v667 = vunpack.c.l.b16 %v184
    %v668 = vunpack.c.h.b16 %v184
    %v669 = vunpack.c.l.b16 %v185
    %v670 = vunpack.c.h.b16 %v185
    %v671 = vunpack.c.l.b16 %v186
    %v672 = vunpack.c.h.b16 %v186
    %v673 = vunpack.c.l.b16 %v187
    %v674 = vunpack.c.h.b16 %v187
    %v675 = vunpack.c.l.b16 %v188
    %v676 = vunpack.c.h.b16 %v188
    %v677 = vunpack.c.l.b16 %v189
    %v678 = vunpack.c.h.b16 %v189
    %v679 = vunpack.c.l.b16 %v190
    %v680 = vunpack.c.h.b16 %v190
    %v681 = vunpack.c.l.b16 %v191
    %v682 = vunpack.c.h.b16 %v191
    %v683 = vunpack.c.l.b16 %v192
    %v684 = vunpack.c.h.b16 %v192
    %v685 = vunpack.c.l.b16 %v193
    %v686 = vunpack.c.h.b16 %v193
    %v687 = vunpack.c.l.b16 %v194
    %v688 = vunpack.c.h.b16 %v194
    %v689 = vunpack.c.l.b16 %v195
    %v690 = vunpack.c.h.b16 %v195
    %v691 = vunpack.c.l.b16 %v196
    %v692 = vunpack.c.h.b16 %v196
    %v693 = vunpack.c.l.b16 %v197
    %v694 = vunpack.c.h.b16 %v197
    %v695 = vunpack.c.l.b16 %v198
    %v696 = vunpack.c.h.b16 %v198
    %v697 = vunpack.c.l.b16 %v199
    %v698 = vunpack.c.h.b16 %v199
    %v699 = vunpack.c.l.b16 %v200
    %v700 = vunpack.c.h.b16 %v200
    %v701 = vunpack.c.l.b16 %v201
    %v702 = vunpack.c.h.b16 %v201
    %v703 = vunpack.c.l.b16 %v202
    %v704 = vunpack.c.h.b16 %v202
    %v705 = vunpack.c.l.b16 %v203
    %v706 = vunpack.c.h.b16 %v203
    %v707 = vunpack.c.l.b16 %v204
    %v708 = vunpack.c.h.b16 %v204
    %v709 = vunpack.c.l.b16 %v205
    %v710 = vunpack.c.h.b16 %v205
    %v711 = vunpack.c.l.b16 %v206
    %v712 = vunpack.c.h.b16 %v206
    %v713 = vunpack.c.l.b16 %v207
    %v714 = vunpack.c.h.b16 %v207
    %v715 = vunpack.c.l.b16 %v208
    %v716 = vunpack.c.h.b16 %v208
    %v717 = vunpack.c.l.b16 %v209
    %v718 = vunpack.c.h.b16 %v209
    %v719 = vunpack.c.l.b16 %v210
    %v720 = vunpack.c.h.b16 %v210
    %v721 = vunpack.c.l.b16 %v211
    %v722 = vunpack.c.h.b16 %v211
    %v723 = vunpack.c.l.b16 %v212
    %v724 = vunpack.c.h.b16 %v212
    %v725 = vunpack.c.l.b16 %v213
    %v726 = vunpack.c.h.b16 %v213
    %v727 = vunpack.c.l.b16 %v214
    %v728 = vunpack.c.h.b16 %v214
    %v729 = vunpack.c.l.b16 %v215
    %v730 = vunpack.c.h.b16 %v215
    %v731 = vunpack.c.l.b16 %v216
    %v732 = vunpack.c.h.b16 %v216
    %v733 = vunpack.c.l.b16 %v217
    %v734 = vunpack.c.h.b16 %v217
    %v735 = vunpack.c.l.b16 %v218
    %v736 = vunpack.c.h.b16 %v218
    %v737 = vunpack.c.l.b16 %v219
    %v738 = vunpack.c.h.b16 %v219
    %v739 = vunpack.c.l.b16 %v220
    %v740 = vunpack.c.h.b16 %v220
    %v741 = vunpack.c.l.b16 %v221
    %v742 = vunpack.c.h.b16 %v221
    %v743 = vunpack.c.l.b16 %v222
    %v744 = vunpack.c.h.b16 %v222
    %v745 = vunpack.c.l.b16 %v223
    %v746 = vunpack.c.h.b16 %v223
    %v747 = vunpack.c.l.b16 %v224
    %v748 = vunpack.c.h.b16 %v224
    %v749 = vunpack.c.l.b16 %v225
    %v750 = vunpack.c.h.b16 %v225
    %v751 = vunpack.c.l.b16 %v226
    %v752 = vunpack.c.h.b16 %v226
    %v753 = vunpack.c.l.b16 %v227
    %v754 = vunpack.c.h.b16 %v227
    %v755 = vunpack.c.l.b16 %v228
    %v756 = vunpack.c.h.b16 %v228
    %v757 = vunpack.c.l.b16 %v229
    %v758 = vunpack.c.h.b16 %v229
    %v759 = vunpack.c.l.b16 %v230
    %v760 = vunpack.c.h.b16 %v230
    %v761 = vunpack.c.l.b16 %v231
    %v762 = vunpack.c.h.b16 %v231
    %v763 = vunpack.c.l.b16 %v232
    %v764 = vunpack.c.h.b16 %v232
    %v765 = vunpack.c.l.b16 %v233
    %v766 = vunpack.c.h.b16 %v233
    %v767 = vunpack.c.l.b16 %v234
    %v768 = vunpack.c.h.b16 %v234
    %v769 = vunpack.c.l.b16 %v235
    %v770 = vunpack.c.h.b16 %v235
    %v771 = vunpack.c.l.b16 %v236
    %v772 = vunpack.c.h.b16 %v236
    %v773 = vunpack.c.l.b16 %v237
    %v774 = vunpack.c.h.b16 %v237
    %v775 = vunpack.c.l.b16 %v238
    %v776 = vunpack.c.h.b16 %v238
    %v777 = vunpack.c.l.b16 %v239
    %v778 = vunpack.c.h.b16 %v239
    %v779 = vunpack.c.l.b16 %v240
    %v780 = vunpack.c.h.b16 %v240
    %v781 = vunpack.c.l.b16 %v241
    %v782 = vunpack.c.h.b16 %v241
    %v783 = vunpack.c.l.b16 %v242
    %v784 = vunpack.c.h.b16 %v242
    %v785 = vunpack.c.l.b16 %v243
    %v786 = vunpack.c.h.b16 %v243
    %v787 = vunpack.c.l.b16 %v244
    %v788 = vunpack.c.h.b16 %v244
    %v789 = vunpack.c.l.b16 %v245
    %v790 = vunpack.c.h.b16 %v245
    %v791 = vunpack.c.l.b16 %v246
    %v792 = vunpack.c.h.b16 %v246
    %v793 = vunpack.c.l.b16 %v247
    %v794 = vunpack.c.h.b16 %v247
    %v795 = vunpack.c.l.b16 %v248
    %v796 = vunpack.c.h.b16 %v248
    %v797 = vunpack.c.l.b16 %v249
    %v798 = vunpack.c.h.b16 %v249
    %v799 = vunpack.c.l.b16 %v250
    %v800 = vunpack.c.h.b16 %v250
    %v801 = vunpack.c.l.b16 %v251
    %v802 = vunpack.c.h.b16 %v251
    %v803 = vunpack.c.l.b16 %v252
    %v804 = vunpack.c.h.b16 %v252
    %v805 = vunpack.c.l.b16 %v253
    %v806 = vunpack.c.h.b16 %v253
    %v807 = vunpack.c.l.b16 %v254
    %v808 = vunpack.c.h.b16 %v254
    %v809 = vunpack.c.l.b16 %v255
    %v810 = vunpack.c.h.b16 %v255
    %v811 = vunpack.c.l.b16 %v256
    %v812 = vunpack.c.h.b16 %v256
    %v813 = vunpack.c.l.b16 %v257
    %v814 = vunpack.c.h.b16 %v257
    %v815 = vunpack.c.l.b16 %v258
    %v816 = vunpack.c.h.b16 %v258
    %v817 = vunpack.c.l.b16 %v259
    %v818 = vunpack.c.h.b16 %v259
    %v819 = vunpack.c.l.b16 %v260
    %v820 = vunpack.c.h.b16 %v260
    %v821 = vunpack.c.l.b16 %v261
    %v822 = vunpack.c.h.b16 %v261
    %v823 = vunpack.c.l.b16 %v262
    %v824 = vunpack.c.h.b16 %v262
    %v825 = vunpack.c.l.b16 %v263
    %v826 = vunpack.c.h.b16 %v263
    %v827 = vunpack.c.l.b16 %v264
    %v828 = vunpack.c.h.b16 %v264
    %v829 = vunpack.c.l.b16 %v265
    %v830 = vunpack.c.h.b16 %v265
    %v831 = vunpack.c.l.b16 %v266
    %v832 = vunpack.c.h.b16 %v266
    %v833 = vunpack.c.l.b16 %v267
    %v834 = vunpack.c.h.b16 %v267
    %v835 = vunpack.c.l.b16 %v268
    %v836 = vunpack.c.h.b16 %v268
    %v837 = vunpack.c.l.b16 %v269
    %v838 = vunpack.c.h.b16 %v269
    %v839 = vunpack.c.l.b16 %v270
    %v840 = vunpack.c.h.b16 %v270
    %v841 = vunpack.c.l.b16 %v271
    %v842 = vunpack.c.h.b16 %v271
    %v843 = vunpack.c.l.b16 %v272
    %v844 = vunpack.c.h.b16 %v272
    %v845 = vunpack.c.l.b16 %v273
    %v846 = vunpack.c.h.b16 %v273
    %v847 = vunpack.c.l.b16 %v274
    %v848 = vunpack.c.h.b16 %v274
    %v849 = vunpack.c.l.b16 %v275
    %v850 = vunpack.c.h.b16 %v275
    %v851 = vunpack.c.l.b16 %v276
    %v852 = vunpack.c.h.b16 %v276
    %v853 = vunpack.c.l.b16 %v277
    %v854 = vunpack.c.h.b16 %v277
    %v855 = vunpack.c.l.b16 %v278
    %v856 = vunpack.c.h.b16 %v278
    %v857 = vunpack.c.l.b16 %v279
    %v858 = vunpack.c.h.b16 %v279
    %v859 = vunpack.c.l.b16 %v280
    %v860 = vunpack.c.h.b16 %v280
    %v861 = vunpack.c.l.b16 %v281
    %v862 = vunpack.c.h.b16 %v281
    %v863 = vunpack.c.l.b16 %v282
    %v864 = vunpack.c.h.b16 %v282
    %v865 = vunpack.c.l.b16 %v283
    %v866 = vunpack.c.h.b16 %v283
    %v867 = vunpack.c.l.b16 %v284
    %v868 = vunpack.c.h.b16 %v284
    %v869 = vunpack.c.l.b16 %v285
    %v870 = vunpack.c.h.b16 %v285
    %v871 = vunpack.c.l.b16 %v286
    %v872 = vunpack.c.h.b16 %v286
    %v873 = vunpack.c.l.b16 %v287
    %v874 = vunpack.c.h.b16 %v287
    %v875 = vunpack.c.l.b16 %v288
    %v876 = vunpack.c.h.b16 %v288
    %v877 = vunpack.c.l.b16 %v289
    %v878 = vunpack.c.h.b16 %v289
    %v879 = vunpack.c.l.b16 %v290
    %v880 = vunpack.c.h.b16 %v290
    %v881 = vunpack.c.l.b16 %v291
    %v882 = vunpack.c.h.b16 %v291
    %v883 = vunpack.c.l.b16 %v292
    %v884 = vunpack.c.h.b16 %v292
    %v885 = vunpack.c.l.b16 %v293
    %v886 = vunpack.c.h.b16 %v293
    %v887 = vunpack.c.l.b16 %v294
    %v888 = vunpack.c.h.b16 %v294
    %v889 = vunpack.c.l.b16 %v295
    %v890 = vunpack.c.h.b16 %v295
    %v891 = vunpack.c.l.b16 %v296
    %v892 = vunpack.c.h.b16 %v296
    %v893 = vunpack.c.l.b16 %v297
    %v894 = vunpack.c.h.b16 %v297
    %v895 = vunpack.c.l.b16 %v298
    %v896 = vunpack.c.h.b16 %v298
    %v897 = vunpack.c.l.b16 %v299
    %v898 = vunpack.c.h.b16 %v299
    %v899 = vunpack.c.l.b16 %v300
    %v900 = vunpack.c.h.b16 %v300
    %v901 = vunpack.c.l.b16 %v301
    %v902 = vunpack.c.h.b16 %v301
    %v903 = vunpack.c.l.b16 %v302
    %v904 = vunpack.c.h.b16 %v302
    %v905 = vunpack.c.l.b16 %v303
    %v906 = vunpack.c.h.b16 %v303
    %v907 = vunpack.c.l.b16 %v304
    %v908 = vunpack.c.h.b16 %v304
    %v909 = vunpack.c.l.b16 %v305
    %v910 = vunpack.c.h.b16 %v305
    %v911 = vunpack.c.l.b16 %v306
    %v912 = vunpack.c.h.b16 %v306
    %v913 = vunpack.c.l.b16 %v307
    %v914 = vunpack.c.h.b16 %v307
    %v915 = vunpack.c.l.b16 %v308
    %v916 = vunpack.c.h.b16 %v308
    %v917 = vunpack.c.l.b16 %v309
    %v918 = vunpack.c.h.b16 %v309
    %v919 = vunpack.c.l.b16 %v310
    %v920 = vunpack.c.h.b16 %v310
    %v921 = vpack.c.b16 %v533, %v529
    %v922 = vpack.c.b16 %v534, %v530
    %v923 = vpack.c.b16 %v535, %v531
    %v924 = vpack.c.b16 %v536, %v532
    %v925 = vpack.c.b16 %v541, %v537
    %v926 = vpack.c.b16 %v542, %v538
    %v927 = vpack.c.b16 %v543, %v539
    %v928 = vpack.c.b16 %v544, %v540
    %v929 = vpack.c.b16 %v549, %v545
    %v930 = vpack.c.b16 %v550, %v546
    %v931 = vpack.c.b16 %v551, %v547
    %v932 = vpack.c.b16 %v552, %v548
    %v933 = vpack.c.b16 %v557, %v553
    %v934 = vpack.c.b16 %v558, %v554
    %v935 = vpack.c.b16 %v559, %v555
    %v936 = vpack.c.b16 %v560, %v556
    %v937 = vpack.c.b16 %v565, %v561
    %v938 = vpack.c.b16 %v566, %v562
    %v939 = vpack.c.b16 %v567, %v563
    %v940 = vpack.c.b16 %v568, %v564
    %v941 = vpack.c.b16 %v573, %v569
    %v942 = vpack.c.b16 %v574, %v570
    %v943 = vpack.c.b16 %v575, %v571
    %v944 = vpack.c.b16 %v576, %v572
    %v945 = vpack.c.b16 %v581, %v577
    %v946 = vpack.c.b16 %v582, %v578
    %v947 = vpack.c.b16 %v583, %v579
    %v948 = vpack.c.b16 %v584, %v580
    %v949 = vpack.c.b16 %v589, %v585
    %v950 = vpack.c.b16 %v590, %v586
    %v951 = vpack.c.b16 %v591, %v587
    %v952 = vpack.c.b16 %v592, %v588
    %v953 = vpack.c.b16 %v597, %v593
    %v954 = vpack.c.b16 %v598, %v594
    %v955 = vpack.c.b16 %v599, %v595
    %v956 = vpack.c.b16 %v600, %v596
    %v957 = vpack.c.b16 %v605, %v601
    %v958 = vpack.c.b16 %v606, %v602
    %v959 = vpack.c.b16 %v607, %v603
    %v960 = vpack.c.b16 %v608, %v604
    %v961 = vpack.c.b16 %v613, %v609
    %v962 = vpack.c.b16 %v614, %v610
    %v963 = vpack.c.b16 %v615, %v611
    %v964 = vpack.c.b16 %v616, %v612
    %v965 = vpack.c.b16 %v621, %v617
    %v966 = vpack.c.b16 %v622, %v618
    %v967 = vpack.c.b16 %v623, %v619
    %v968 = vpack.c.b16 %v624, %v620
    %v969 = vpack.c.b16 %v629, %v625
    %v970 = vpack.c.b16 %v630, %v626
    %v971 = vpack.c.b16 %v631, %v627
    %v972 = vpack.c.b16 %v632, %v628
    %v973 = vpack.c.b16 %v637, %v633
    %v974 = vpack.c.b16 %v638, %v634
    %v975 = vpack.c.b16 %v639, %v635
    %v976 = vpack.c.b16 %v640, %v636
    %v977 = vpack.c.b16 %v645, %v641
    %v978 = vpack.c.b16 %v646, %v642
    %v979 = vpack.c.b16 %v647, %v643
    %v980 = vpack.c.b16 %v648, %v644
    %v981 = vpack.c.b16 %v653, %v649
    %v982 = vpack.c.b16 %v654, %v650
    %v983 = vpack.c.b16 %v655, %v651
    %v984 = vpack.c.b16 %v656, %v652
    %v985 = vpack.c.b16 %v661, %v657
    %v986 = vpack.c.b16 %v662, %v658
    %v987 = vpack.c.b16 %v663, %v659
    %v988 = vpack.c.b16 %v664, %v660
    %v989 = vpack.c.b16 %v669, %v665
    %v990 = vpack.c.b16 %v670, %v666
    %v991 = vpack.c.b16 %v671, %v667
    %v992 = vpack.c.b16 %v672, %v668
    %v993 = vpack.c.b16 %v677, %v673
    %v994 = vpack.c.b16 %v678, %v674
    %v995 = vpack.c.b16 %v679, %v675
    %v996 = vpack.c.b16 %v680, %v676
    %v997 = vpack.c.b16 %v685, %v681
    %v998 = vpack.c.b16 %v686, %v682
    %v999 = vpack.c.b16 %v687, %v683
    %v1000 = vpack.c.b16 %v688, %v684
    %v1001 = vpack.c.b16 %v693, %v689
    %v1002 = vpack.c.b16 %v694, %v690
    %v1003 = vpack.c.b16 %v695, %v691
    %v1004 = vpack.c.b16 %v696, %v692
    %v1005 = vpack.c.b16 %v701, %v697
    %v1006 = vpack.c.b16 %v702, %v698
    %v1007 = vpack.c.b16 %v703, %v699
    %v1008 = vpack.c.b16 %v704, %v700
    %v1009 = vpack.c.b16 %v709, %v705
    %v1010 = vpack.c.b16 %v710, %v706
    %v1011 = vpack.c.b16 %v711, %v707
    %v1012 = vpack.c.b16 %v712, %v708
    %v1013 = vpack.c.b16 %v717, %v713
    %v1014 = vpack.c.b16 %v718, %v714
    %v1015 = vpack.c.b16 %v719, %v715
    %v1016 = vpack.c.b16 %v720, %v716
    %v1017 = vpack.c.b16 %v725, %v721
    %v1018 = vpack.c.b16 %v726, %v722
    %v1019 = vpack.c.b16 %v727, %v723
    %v1020 = vpack.c.b16 %v728, %v724
    %v1021 = vpack.c.b16 %v733, %v729
    %v1022 = vpack.c.b16 %v734, %v730
    %v1023 = vpack.c.b16 %v735, %v731
    %v1024 = vpack.c.b16 %v736, %v732
    %v1025 = vpack.c.b16 %v741, %v737
    %v1026 = vpack.c.b16 %v742, %v738
    %v1027 = vpack.c.b16 %v743, %v739
    %v1028 = vpack.c.b16 %v744, %v740
    %v1029 = vpack.c.b16 %v749, %v745
    %v1030 = vpack.c.b16 %v750, %v746
    %v1031 = vpack.c.b16 %v751, %v747
    %v1032 = vpack.c.b16 %v752, %v748
    %v1033 = vpack.c.b16 %v757, %v753
    %v1034 = vpack.c.b16 %v758, %v754
    %v1035 = vpack.c.b16 %v759, %v755
    %v1036 = vpack.c.b16 %v760, %v756
    %v1037 = vpack.c.b16 %v765, %v761
    %v1038 = vpack.c.b16 %v766, %v762
    %v1039 = vpack.c.b16 %v767, %v763
    %v1040 = vpack.c.b16 %v768, %v764
    %v1041 = vpack.c.b16 %v773, %v769
    %v1042 = vpack.c.b16 %v774, %v770
    %v1043 = vpack.c.b16 %v775, %v771
    %v1044 = vpack.c.b16 %v776, %v772
    %v1045 = vpack.c.b16 %v781, %v777
    %v1046 = vpack.c.b16 %v782, %v778
    %v1047 = vpack.c.b16 %v783, %v779
    %v1048 = vpack.c.b16 %v784, %v780
    %v1049 = vpack.c.b16 %v789, %v785
    %v1050 = vpack.c.b16 %v790, %v786
    %v1051 = vpack.c.b16 %v791, %v787
    %v1052 = vpack.c.b16 %v792, %v788
    %v1053 = vpack.c.b16 %v797, %v793
    %v1054 = vpack.c.b16 %v798, %v794
    %v1055 = vpack.c.b16 %v799, %v795
    %v1056 = vpack.c.b16 %v800, %v796
    %v1057 = vpack.c.b16 %v805, %v801
    %v1058 = vpack.c.b16 %v806, %v802
    %v1059 = vpack.c.b16 %v807, %v803
    %v1060 = vpack.c.b16 %v808, %v804
    %v1061 = vpack.c.b16 %v813, %v809
    %v1062 = vpack.c.b16 %v814, %v810
    %v1063 = vpack.c.b16 %v815, %v811
    %v1064 = vpack.c.b16 %v816, %v812
    %v1065 = vpack.c.b16 %v821, %v817
    %v1066 = vpack.c.b16 %v822, %v818
    %v1067 = vpack.c.b16 %v823, %v819
    %v1068 = vpack.c.b16 %v824, %v820
    %v1069 = vpack.c.b16 %v829, %v825
    %v1070 = vpack.c.b16 %v830, %v826
    %v1071 = vpack.c.b16 %v831, %v827
    %v1072 = vpack.c.b16 %v832, %v828
    %v1073 = vpack.c.b16 %v837, %v833
    %v1074 = vpack.c.b16 %v838, %v834
    %v1075 = vpack.c.b16 %v839, %v835
    %v1076 = vpack.c.b16 %v840, %v836
    %v1077 = vpack.c.b16 %v845, %v841
    %v1078 = vpack.c.b16 %v846, %v842
    %v1079 = vpack.c.b16 %v847, %v843
    %v1080 = vpack.c.b16 %v848, %v844
    %v1081 = vpack.c.b16 %v853, %v849
    %v1082 = vpack.c.b16 %v854, %v850
    %v1083 = vpack.c.b16 %v855, %v851
    %v1084 = vpack.c.b16 %v856, %v852
    %v1085 = vpack.c.b16 %v861, %v857
    %v1086 = vpack.c.b16 %v862, %v858
    %v1087 = vpack.c.b16 %v863, %v859
    %v1088 = vpack.c.b16 %v864, %v860
    %v1089 = vpack.c.b16 %v869, %v865
    %v1090 = vpack.c.b16 %v870, %v866
    %v1091 = vpack.c.b16 %v871, %v867
    %v1092 = vpack.c.b16 %v872, %v868
    %v1093 = vpack.c.b16 %v877, %v873
    %v1094 = vpack.c.b16 %v878, %v874
    %v1095 = vpack.c.b16 %v879, %v875
    %v1096 = vpack.c.b16 %v880, %v876
    %v1097 = vpack.c.b16 %v885, %v881
    %v1098 = vpack.c.b16 %v886, %v882
    %v1099 = vpack.c.b16 %v887, %v883
    %v1100 = vpack.c.b16 %v888, %v884
    %v1101 = vpack.c.b16 %v893, %v889
    %v1102 = vpack.c.b16 %v894, %v890
    %v1103 = vpack.c.b16 %v895, %v891
    %v1104 = vpack.c.b16 %v896, %v892
    %v1105 = vpack.c.b16 %v901, %v897
    %v1106 = vpack.c.b16 %v902, %v898
    %v1107 = vpack.c.b16 %v903, %v899
    %v1108 = vpack.c.b16 %v904, %v900
    %v1109 = vpack.c.b16 %v909, %v905
    %v1110 = vpack.c.b16 %v910, %v906
    %v1111 = vpack.c.b16 %v911, %v907
    %v1112 = vpack.c.b16 %v912, %v908
    %v1113 = vpack.c.b16 %v917, %v913
    %v1114 = vpack.c.b16 %v918, %v914
    %v1115 = vpack.c.b16 %v919, %v915
    %v1116 = vpack.c.b16 %v920, %v916
    %vm1313 = vcmask 130048
    %v1315 = vsel %vm1313, %v114, 0
    %1317 = vmatprep.subr.bf16.mxu0 %v922
    %1318 = vmatpush1.bf16.msra.mxu0 %v921
    %1319 = vmatprep.subr.bf16.mxu0 %v926
    %1320 = vmatpush1.bf16.msra.mxu0 %v925
    %1321 = vmatprep.subr.bf16.mxu0 %v930
    %1322 = vmatpush1.bf16.msra.mxu0 %v929
    %1323 = vmatprep.subr.bf16.mxu0 %v934
    %1324 = vmatpush1.bf16.msra.mxu0 %v933
    %1325 = vmatprep.subr.bf16.mxu0 %v938
    %1326 = vmatpush1.bf16.msra.mxu0 %v937
    %1327 = vmatprep.subr.bf16.mxu0 %v942
    %1328 = vmatpush1.bf16.msra.mxu0 %v941
    %1329 = vmatprep.subr.bf16.mxu0 %v946
    %1330 = vmatpush1.bf16.msra.mxu0 %v945
    %1331 = vmatprep.subr.bf16.mxu0 %v950
    %1332 = vmatpush1.bf16.msra.mxu0 %v949
    %1333 = vmatprep.subr.bf16.mxu0 %v954
    %1334 = vmatpush1.bf16.msra.mxu0 %v953
    %1335 = vmatprep.subr.bf16.mxu0 %v958
    %1336 = vmatpush1.bf16.msra.mxu0 %v957
    %1337 = vmatprep.subr.bf16.mxu0 %v962
    %1338 = vmatpush1.bf16.msra.mxu0 %v961
    %1339 = vmatprep.subr.bf16.mxu0 %v966
    %1340 = vmatpush1.bf16.msra.mxu0 %v965
    %1341 = vmatprep.subr.bf16.mxu0 %v970
    %1342 = vmatpush1.bf16.msra.mxu0 %v969
    %1343 = vmatprep.subr.bf16.mxu0 %v974
    %1344 = vmatpush1.bf16.msra.mxu0 %v973
    %1345 = vmatprep.subr.bf16.mxu0 %v978
    %1346 = vmatpush1.bf16.msra.mxu0 %v977
    %1347 = vmatprep.subr.bf16.mxu0 %v982
    %1348 = vmatpush1.bf16.msra.mxu0 %v981
    %1349 = vmatprep.mubr.bf16.mxu0 %v109
    %1350 = vmatmul.mubr.bf16.gmra.mrb[0].mxu0 %v108
    %v1351 = vpop.f32.mrb[0].mxu0
    %v1352 = vadd.f32 %v316, %v1351
    %v1353 = vpop.f32.mrb[0].mxu0
    %v1354 = vadd.f32 %v320, %v1353
    %v1355 = vpop.f32.mrb[0].mxu0
    %v1356 = vadd.f32 %v316, %v1355
    %v1357 = vpop.f32.mrb[0].mxu0
    %v1358 = vadd.f32 %v320, %v1357
    %1359 = vdwg.mxu0
    %1360 = vmatprep.subr.bf16.mxu0 %v986
    %1361 = vmatpush1.bf16.msra.mxu0 %v985
    %1362 = vmatprep.subr.bf16.mxu0 %v990
    %1363 = vmatpush1.bf16.msra.mxu0 %v989
    %1364 = vmatprep.subr.bf16.mxu0 %v994
    %1365 = vmatpush1.bf16.msra.mxu0 %v993
    %1366 = vmatprep.subr.bf16.mxu0 %v998
    %1367 = vmatpush1.bf16.msra.mxu0 %v997
    %1368 = vmatprep.subr.bf16.mxu0 %v1002
    %1369 = vmatpush1.bf16.msra.mxu0 %v1001
    %1370 = vmatprep.subr.bf16.mxu0 %v1006
    %1371 = vmatpush1.bf16.msra.mxu0 %v1005
    %1372 = vmatprep.subr.bf16.mxu0 %v1010
    %1373 = vmatpush1.bf16.msra.mxu0 %v1009
    %1374 = vmatprep.subr.bf16.mxu0 %v1014
    %1375 = vmatpush1.bf16.msra.mxu0 %v1013
    %1376 = vmatprep.subr.bf16.mxu0 %v1018
    %1377 = vmatpush1.bf16.msra.mxu0 %v1017
    %1378 = vmatprep.subr.bf16.mxu0 %v1022
    %1379 = vmatpush1.bf16.msra.mxu0 %v1021
    %1380 = vmatprep.subr.bf16.mxu0 %v1026
    %1381 = vmatpush1.bf16.msra.mxu0 %v1025
    %1382 = vmatprep.subr.bf16.mxu0 %v1030
    %1383 = vmatpush1.bf16.msra.mxu0 %v1029
    %1384 = vmatprep.subr.bf16.mxu0 %v1034
    %1385 = vmatpush1.bf16.msra.mxu0 %v1033
    %1386 = vmatprep.subr.bf16.mxu0 %v1038
    %1387 = vmatpush1.bf16.msra.mxu0 %v1037
    %1388 = vmatprep.subr.bf16.mxu0 %v1042
    %1389 = vmatpush1.bf16.msra.mxu0 %v1041
    %1390 = vmatprep.subr.bf16.mxu0 %v1046
    %1391 = vmatpush1.bf16.msra.mxu0 %v1045
    %1392 = vmatprep.mubr.bf16.mxu0 %v111
    %1393 = vmatmul.mubr.bf16.gmra.mrb[0].mxu0 %v110
    %v1394 = vpop.f32.mrb[0].mxu0
    %v1395 = vadd.f32 %v1352, %v1394
    %v1396 = vpop.f32.mrb[0].mxu0
    %v1397 = vadd.f32 %v1354, %v1396
    %v1398 = vpop.f32.mrb[0].mxu0
    %v1399 = vadd.f32 %v1356, %v1398
    %v1400 = vpop.f32.mrb[0].mxu0
    %v1401 = vadd.f32 %v1358, %v1400
    %1402 = vdwg.mxu0
    %1403 = vmatprep.subr.bf16.mxu0 %v1050
    %1404 = vmatpush1.bf16.msra.mxu0 %v1049
    %1405 = vmatprep.subr.bf16.mxu0 %v1054
    %1406 = vmatpush1.bf16.msra.mxu0 %v1053
    %1407 = vmatprep.subr.bf16.mxu0 %v1058
    %1408 = vmatpush1.bf16.msra.mxu0 %v1057
    %1409 = vmatprep.subr.bf16.mxu0 %v1062
    %1410 = vmatpush1.bf16.msra.mxu0 %v1061
    %1411 = vmatprep.subr.bf16.mxu0 %v1066
    %1412 = vmatpush1.bf16.msra.mxu0 %v1065
    %1413 = vmatprep.subr.bf16.mxu0 %v1070
    %1414 = vmatpush1.bf16.msra.mxu0 %v1069
    %1415 = vmatprep.subr.bf16.mxu0 %v1074
    %1416 = vmatpush1.bf16.msra.mxu0 %v1073
    %1417 = vmatprep.subr.bf16.mxu0 %v1078
    %1418 = vmatpush1.bf16.msra.mxu0 %v1077
    %1419 = vmatprep.subr.bf16.mxu0 %v1082
    %1420 = vmatpush1.bf16.msra.mxu0 %v1081
    %1421 = vmatprep.subr.bf16.mxu0 %v1086
    %1422 = vmatpush1.bf16.msra.mxu0 %v1085
    %1423 = vmatprep.subr.bf16.mxu0 %v1090
    %1424 = vmatpush1.bf16.msra.mxu0 %v1089
    %1425 = vmatprep.subr.bf16.mxu0 %v1094
    %1426 = vmatpush1.bf16.msra.mxu0 %v1093
    %1427 = vmatprep.subr.bf16.mxu0 %v1098
    %1428 = vmatpush1.bf16.msra.mxu0 %v1097
    %1429 = vmatprep.subr.bf16.mxu0 %v1102
    %1430 = vmatpush1.bf16.msra.mxu0 %v1101
    %1431 = vmatprep.subr.bf16.mxu0 %v1106
    %1432 = vmatpush1.bf16.msra.mxu0 %v1105
    %1433 = vmatprep.subr.bf16.mxu0 %v1110
    %1434 = vmatpush1.bf16.msra.mxu0 %v1109
    %1435 = vmatprep.mubr.bf16.mxu0 %v113
    %1436 = vmatmul.mubr.bf16.gmra.mrb[0].mxu0 %v112
    %v1437 = vpop.f32.mrb[0].mxu0
    %v1438 = vadd.f32 %v1395, %v1437
    %v1439 = vpop.f32.mrb[0].mxu0
    %v1440 = vadd.f32 %v1397, %v1439
    %v1441 = vpop.f32.mrb[0].mxu0
    %v1442 = vadd.f32 %v1399, %v1441
    %v1443 = vpop.f32.mrb[0].mxu0
    %v1444 = vadd.f32 %v1401, %v1443
    %1445 = vdwg.mxu0
    %1446 = vmatprep.subr.bf16.mxu0 %v1114
    %1447 = vmatpush1.bf16.msra.mxu0 %v1113
    %1448 = vmatprep.subr.bf16.mxu0 0
    %1449 = vmatpush1.bf16.msra.mxu0 0
    %1450 = vmatprep.subr.bf16.mxu0 0
    %1451 = vmatpush1.bf16.msra.mxu0 0
    %1452 = vmatprep.subr.bf16.mxu0 0
    %1453 = vmatpush1.bf16.msra.mxu0 0
    %1454 = vmatprep.subr.bf16.mxu0 0
    %1455 = vmatpush1.bf16.msra.mxu0 0
    %1456 = vmatprep.subr.bf16.mxu0 0
    %1457 = vmatpush1.bf16.msra.mxu0 0
    %1458 = vmatprep.subr.bf16.mxu0 0
    %1459 = vmatpush1.bf16.msra.mxu0 0
    %1460 = vmatprep.subr.bf16.mxu0 0
    %1461 = vmatpush1.bf16.msra.mxu0 0
    %1462 = vmatprep.subr.bf16.mxu0 0
    %1463 = vmatpush1.bf16.msra.mxu0 0
    %1464 = vmatprep.subr.bf16.mxu0 0
    %1465 = vmatpush1.bf16.msra.mxu0 0
    %1466 = vmatprep.subr.bf16.mxu0 0
    %1467 = vmatpush1.bf16.msra.mxu0 0
    %1468 = vmatprep.subr.bf16.mxu0 0
    %1469 = vmatpush1.bf16.msra.mxu0 0
    %1470 = vmatprep.subr.bf16.mxu0 0
    %1471 = vmatpush1.bf16.msra.mxu0 0
    %1472 = vmatprep.subr.bf16.mxu0 0
    %1473 = vmatpush1.bf16.msra.mxu0 0
    %1474 = vmatprep.subr.bf16.mxu0 0
    %1475 = vmatpush1.bf16.msra.mxu0 0
    %1476 = vmatprep.subr.bf16.mxu0 0
    %1477 = vmatpush1.bf16.msra.mxu0 0
    %1478 = vmatprep.mubr.bf16.mxu0 0
    %1479 = vmatmul.mubr.bf16.gmra.mrb[0].mxu0 %v1315
    %v1480 = vpop.f32.mrb[0].mxu0
    %v1481 = vadd.f32 %v1438, %v1480
    %v1482 = vpop.f32.mrb[0].mxu0
    %v1483 = vadd.f32 %v1440, %v1482
    %v1484 = vpop.f32.mrb[0].mxu0
    %v1485 = vadd.f32 %v1442, %v1484
    %v1486 = vpop.f32.mrb[0].mxu0
    %v1487 = vadd.f32 %v1444, %v1486
    %1488 = vdwg.mxu0
    %1489 = vmatprep.subr.bf16.mxu0 %v924
    %1490 = vmatpush1.bf16.msra.mxu0 %v923
    %1491 = vmatprep.subr.bf16.mxu0 %v928
    %1492 = vmatpush1.bf16.msra.mxu0 %v927
    %1493 = vmatprep.subr.bf16.mxu0 %v932
    %1494 = vmatpush1.bf16.msra.mxu0 %v931
    %1495 = vmatprep.subr.bf16.mxu0 %v936
    %1496 = vmatpush1.bf16.msra.mxu0 %v935
    %1497 = vmatprep.subr.bf16.mxu0 %v940
    %1498 = vmatpush1.bf16.msra.mxu0 %v939
    %1499 = vmatprep.subr.bf16.mxu0 %v944
    %1500 = vmatpush1.bf16.msra.mxu0 %v943
    %1501 = vmatprep.subr.bf16.mxu0 %v948
    %1502 = vmatpush1.bf16.msra.mxu0 %v947
    %1503 = vmatprep.subr.bf16.mxu0 %v952
    %1504 = vmatpush1.bf16.msra.mxu0 %v951
    %1505 = vmatprep.subr.bf16.mxu0 %v956
    %1506 = vmatpush1.bf16.msra.mxu0 %v955
    %1507 = vmatprep.subr.bf16.mxu0 %v960
    %1508 = vmatpush1.bf16.msra.mxu0 %v959
    %1509 = vmatprep.subr.bf16.mxu0 %v964
    %1510 = vmatpush1.bf16.msra.mxu0 %v963
    %1511 = vmatprep.subr.bf16.mxu0 %v968
    %1512 = vmatpush1.bf16.msra.mxu0 %v967
    %1513 = vmatprep.subr.bf16.mxu0 %v972
    %1514 = vmatpush1.bf16.msra.mxu0 %v971
    %1515 = vmatprep.subr.bf16.mxu0 %v976
    %1516 = vmatpush1.bf16.msra.mxu0 %v975
    %1517 = vmatprep.subr.bf16.mxu0 %v980
    %1518 = vmatpush1.bf16.msra.mxu0 %v979
    %1519 = vmatprep.subr.bf16.mxu0 %v984
    %1520 = vmatpush1.bf16.msra.mxu0 %v983
    %1521 = vmatprep.mubr.bf16.mxu0 %v109
    %1522 = vmatmul.mubr.bf16.gmra.mrb[0].mxu0 %v108
    %v1523 = vpop.f32.mrb[0].mxu0
    %v1524 = vadd.f32 %v324, %v1523
    %v1525 = vpop.f32.mrb[0].mxu0
    %v1526 = vadd.f32 %v328, %v1525
    %v1527 = vpop.f32.mrb[0].mxu0
    %v1528 = vadd.f32 %v324, %v1527
    %v1529 = vpop.f32.mrb[0].mxu0
    %v1530 = vadd.f32 %v328, %v1529
    %1531 = vdwg.mxu0
    %1532 = vmatprep.subr.bf16.mxu0 %v988
    %1533 = vmatpush1.bf16.msra.mxu0 %v987
    %1534 = vmatprep.subr.bf16.mxu0 %v992
    %1535 = vmatpush1.bf16.msra.mxu0 %v991
    %1536 = vmatprep.subr.bf16.mxu0 %v996
    %1537 = vmatpush1.bf16.msra.mxu0 %v995
    %1538 = vmatprep.subr.bf16.mxu0 %v1000
    %1539 = vmatpush1.bf16.msra.mxu0 %v999
    %1540 = vmatprep.subr.bf16.mxu0 %v1004
    %1541 = vmatpush1.bf16.msra.mxu0 %v1003
    %1542 = vmatprep.subr.bf16.mxu0 %v1008
    %1543 = vmatpush1.bf16.msra.mxu0 %v1007
    %1544 = vmatprep.subr.bf16.mxu0 %v1012
    %1545 = vmatpush1.bf16.msra.mxu0 %v1011
    %1546 = vmatprep.subr.bf16.mxu0 %v1016
    %1547 = vmatpush1.bf16.msra.mxu0 %v1015
    %1548 = vmatprep.subr.bf16.mxu0 %v1020
    %1549 = vmatpush1.bf16.msra.mxu0 %v1019
    %1550 = vmatprep.subr.bf16.mxu0 %v1024
    %1551 = vmatpush1.bf16.msra.mxu0 %v1023
    %1552 = vmatprep.subr.bf16.mxu0 %v1028
    %1553 = vmatpush1.bf16.msra.mxu0 %v1027
    %1554 = vmatprep.subr.bf16.mxu0 %v1032
    %1555 = vmatpush1.bf16.msra.mxu0 %v1031
    %1556 = vmatprep.subr.bf16.mxu0 %v1036
    %1557 = vmatpush1.bf16.msra.mxu0 %v1035
    %1558 = vmatprep.subr.bf16.mxu0 %v1040
    %1559 = vmatpush1.bf16.msra.mxu0 %v1039
    %1560 = vmatprep.subr.bf16.mxu0 %v1044
    %1561 = vmatpush1.bf16.msra.mxu0 %v1043
    %1562 = vmatprep.subr.bf16.mxu0 %v1048
    %1563 = vmatpush1.bf16.msra.mxu0 %v1047
    %1564 = vmatprep.mubr.bf16.mxu0 %v111
    %1565 = vmatmul.mubr.bf16.gmra.mrb[0].mxu0 %v110
    %v1566 = vpop.f32.mrb[0].mxu0
    %v1567 = vadd.f32 %v1524, %v1566
    %v1568 = vpop.f32.mrb[0].mxu0
    %v1569 = vadd.f32 %v1526, %v1568
    %v1570 = vpop.f32.mrb[0].mxu0
    %v1571 = vadd.f32 %v1528, %v1570
    %v1572 = vpop.f32.mrb[0].mxu0
    %v1573 = vadd.f32 %v1530, %v1572
    %1574 = vdwg.mxu0
    %1575 = vmatprep.subr.bf16.mxu0 %v1052
    %1576 = vmatpush1.bf16.msra.mxu0 %v1051
    %1577 = vmatprep.subr.bf16.mxu0 %v1056
    %1578 = vmatpush1.bf16.msra.mxu0 %v1055
    %1579 = vmatprep.subr.bf16.mxu0 %v1060
    %1580 = vmatpush1.bf16.msra.mxu0 %v1059
    %1581 = vmatprep.subr.bf16.mxu0 %v1064
    %1582 = vmatpush1.bf16.msra.mxu0 %v1063
    %1583 = vmatprep.subr.bf16.mxu0 %v1068
    %1584 = vmatpush1.bf16.msra.mxu0 %v1067
    %1585 = vmatprep.subr.bf16.mxu0 %v1072
    %1586 = vmatpush1.bf16.msra.mxu0 %v1071
    %1587 = vmatprep.subr.bf16.mxu0 %v1076
    %1588 = vmatpush1.bf16.msra.mxu0 %v1075
    %1589 = vmatprep.subr.bf16.mxu0 %v1080
    %1590 = vmatpush1.bf16.msra.mxu0 %v1079
    %1591 = vmatprep.subr.bf16.mxu0 %v1084
    %1592 = vmatpush1.bf16.msra.mxu0 %v1083
    %1593 = vmatprep.subr.bf16.mxu0 %v1088
    %1594 = vmatpush1.bf16.msra.mxu0 %v1087
    %1595 = vmatprep.subr.bf16.mxu0 %v1092
    %1596 = vmatpush1.bf16.msra.mxu0 %v1091
    %1597 = vmatprep.subr.bf16.mxu0 %v1096
    %1598 = vmatpush1.bf16.msra.mxu0 %v1095
    %1599 = vmatprep.subr.bf16.mxu0 %v1100
    %1600 = vmatpush1.bf16.msra.mxu0 %v1099
    %1601 = vmatprep.subr.bf16.mxu0 %v1104
    %1602 = vmatpush1.bf16.msra.mxu0 %v1103
    %1603 = vmatprep.subr.bf16.mxu0 %v1108
    %1604 = vmatpush1.bf16.msra.mxu0 %v1107
    %1605 = vmatprep.subr.bf16.mxu0 %v1112
    %1606 = vmatpush1.bf16.msra.mxu0 %v1111
    %1607 = vmatprep.mubr.bf16.mxu0 %v113
    %1608 = vmatmul.mubr.bf16.gmra.mrb[0].mxu0 %v112
    %v1609 = vpop.f32.mrb[0].mxu0
    %v1610 = vadd.f32 %v1567, %v1609
    %v1611 = vpop.f32.mrb[0].mxu0
    %v1612 = vadd.f32 %v1569, %v1611
    %v1613 = vpop.f32.mrb[0].mxu0
    %v1614 = vadd.f32 %v1571, %v1613
    %v1615 = vpop.f32.mrb[0].mxu0
    %v1616 = vadd.f32 %v1573, %v1615
    %1617 = vdwg.mxu0
    %1618 = vmatprep.subr.bf16.mxu0 %v1116
    %1619 = vmatpush1.bf16.msra.mxu0 %v1115
    %1620 = vmatprep.subr.bf16.mxu0 0
    %1621 = vmatpush1.bf16.msra.mxu0 0
    %1622 = vmatprep.subr.bf16.mxu0 0
    %1623 = vmatpush1.bf16.msra.mxu0 0
    %1624 = vmatprep.subr.bf16.mxu0 0
    %1625 = vmatpush1.bf16.msra.mxu0 0
    %1626 = vmatprep.subr.bf16.mxu0 0
    %1627 = vmatpush1.bf16.msra.mxu0 0
    %1628 = vmatprep.subr.bf16.mxu0 0
    %1629 = vmatpush1.bf16.msra.mxu0 0
    %1630 = vmatprep.subr.bf16.mxu0 0
    %1631 = vmatpush1.bf16.msra.mxu0 0
    %1632 = vmatprep.subr.bf16.mxu0 0
    %1633 = vmatpush1.bf16.msra.mxu0 0
    %1634 = vmatprep.subr.bf16.mxu0 0
    %1635 = vmatpush1.bf16.msra.mxu0 0
    %1636 = vmatprep.subr.bf16.mxu0 0
    %1637 = vmatpush1.bf16.msra.mxu0 0
    %1638 = vmatprep.subr.bf16.mxu0 0
    %1639 = vmatpush1.bf16.msra.mxu0 0
    %1640 = vmatprep.subr.bf16.mxu0 0
    %1641 = vmatpush1.bf16.msra.mxu0 0
    %1642 = vmatprep.subr.bf16.mxu0 0
    %1643 = vmatpush1.bf16.msra.mxu0 0
    %1644 = vmatprep.subr.bf16.mxu0 0
    %1645 = vmatpush1.bf16.msra.mxu0 0
    %1646 = vmatprep.subr.bf16.mxu0 0
    %1647 = vmatpush1.bf16.msra.mxu0 0
    %1648 = vmatprep.subr.bf16.mxu0 0
    %1649 = vmatpush1.bf16.msra.mxu0 0
    %1650 = vmatprep.mubr.bf16.mxu0 0
    %1651 = vmatmul.mubr.bf16.gmra.mrb[0].mxu0 %v1315
    %v1652 = vpop.f32.mrb[0].mxu0
    %v1653 = vadd.f32 %v1610, %v1652
    %v1654 = vpop.f32.mrb[0].mxu0
    %v1655 = vadd.f32 %v1612, %v1654
    %v1656 = vpop.f32.mrb[0].mxu0
    %v1657 = vadd.f32 %v1614, %v1656
    %v1658 = vpop.f32.mrb[0].mxu0
    %v1659 = vadd.f32 %v1616, %v1658
    %1660 = vdwg.mxu0
    %v1661 = vmax.f32 %v1481, 0.0
    %v1662 = vmax.f32 %v1483, 0.0
    %v1663 = vmax.f32 %v1653, 0.0
    %v1664 = vmax.f32 %v1655, 0.0
    %v1665 = vmax.f32 %v1485, 0.0
    %v1666 = vmax.f32 %v1487, 0.0
    %v1667 = vmax.f32 %v1657, 0.0
    %v1668 = vmax.f32 %v1659, 0.0
    %v1669 = vpack.c.bf16 %v1665, %v1661
    %v1670 = vpack.c.bf16 %v1666, %v1662
    %v1671 = vpack.c.bf16 %v1667, %v1663
    %v1672 = vpack.c.bf16 %v1668, %v1664
    %v1673 = vld [vmem:[#allocation4] sm:$0xff]
    %v1674 = vld [vmem:[#allocation4 + $0x8] sm:$0xff]
    %v1675 = vld [vmem:[#allocation4 + $0x10] sm:$0xff]
    %v1676 = vld [vmem:[#allocation4 + $0x18] sm:$0xff]
    %v1677 = vld [vmem:[#allocation4 + $0x20] sm:$0xff]
    %v1678 = vld [vmem:[#allocation4 + $0x28] sm:$0xff]
    %v1679 = vld [vmem:[#allocation4 + $0x30] sm:$0xff]
    %v1680 = vld [vmem:[#allocation4 + $0x38] sm:$0xff]
    %v1681 = vld [vmem:[#allocation4 + $0x40] sm:$0xff]
    %v1682 = vld [vmem:[#allocation4 + $0x48] sm:$0xff]
    %v1683 = vld [vmem:[#allocation4 + $0x50] sm:$0xff]
    %v1684 = vld [vmem:[#allocation4 + $0x58] sm:$0xff]
    %v1685 = vld [vmem:[#allocation4 + $0x60] sm:$0xff]
    %v1686 = vld [vmem:[#allocation4 + $0x68] sm:$0xff]
    %v1687 = vld [vmem:[#allocation4 + $0x70] sm:$0xff]
    %v1688 = vld [vmem:[#allocation4 + $0x78] sm:$0xff]
    %v1689 = vld [vmem:[#allocation4 + $0x80] sm:$0xff]
    %v1690 = vld [vmem:[#allocation4 + $0x88] sm:$0xff]
    %v1691 = vld [vmem:[#allocation4 + $0x90] sm:$0xff]
    %v1692 = vld [vmem:[#allocation4 + $0x98] sm:$0xff]
    %v1693 = vld [vmem:[#allocation4 + $0xa0] sm:$0xff]
    %v1694 = vld [vmem:[#allocation4 + $0xa8] sm:$0xff]
    %v1695 = vld [vmem:[#allocation4 + $0xb0] sm:$0xff]
    %v1696 = vld [vmem:[#allocation4 + $0xb8] sm:$0xff]
    %v1697 = vld [vmem:[#allocation4 + $0xc0] sm:$0xff]
    %v1698 = vld [vmem:[#allocation4 + $0xc8] sm:$0xff]
    %v1699 = vld [vmem:[#allocation4 + $0xd0] sm:$0xff]
    %v1700 = vld [vmem:[#allocation4 + $0xd8] sm:$0xff]
    %v1701 = vld [vmem:[#allocation4 + $0xe0] sm:$0xff]
    %v1702 = vld [vmem:[#allocation4 + $0xe8] sm:$0xff]
    %v1703 = vld [vmem:[#allocation4 + $0xf0] sm:$0xff]
    %v1704 = vld [vmem:[#allocation4 + $0xf8] sm:$0xff]
    %v1705 = vld [vmem:[#allocation4 + $0x100] sm:$0xff]
    %v1706 = vld [vmem:[#allocation4 + $0x108] sm:$0xff]
    %v1707 = vld [vmem:[#allocation4 + $0x110] sm:$0xff]
    %v1708 = vld [vmem:[#allocation4 + $0x118] sm:$0xff]
    %v1709 = vld [vmem:[#allocation4 + $0x120] sm:$0xff]
    %v1710 = vld [vmem:[#allocation4 + $0x128] sm:$0xff]
    %v1711 = vld [vmem:[#allocation4 + $0x130] sm:$0xff]
    %v1712 = vld [vmem:[#allocation4 + $0x138] sm:$0xff]
    %v1713 = vld [vmem:[#allocation4 + $0x140] sm:$0xff]
    %v1714 = vld [vmem:[#allocation4 + $0x148] sm:$0xff]
    %v1715 = vld [vmem:[#allocation4 + $0x150] sm:$0xff]
    %v1716 = vld [vmem:[#allocation4 + $0x158] sm:$0xff]
    %v1717 = vld [vmem:[#allocation4 + $0x160] sm:$0xff]
    %v1718 = vld [vmem:[#allocation4 + $0x168] sm:$0xff]
    %v1719 = vld [vmem:[#allocation4 + $0x170] sm:$0xff]
    %v1720 = vld [vmem:[#allocation4 + $0x178] sm:$0xff]
    %v1721 = vld [vmem:[#allocation4 + $0x180] sm:$0xff]
    %v1722 = vld [vmem:[#allocation4 + $0x188] sm:$0xff]
    %v1723 = vld [vmem:[#allocation4 + $0x190] sm:$0xff]
    %v1724 = vld [vmem:[#allocation4 + $0x198] sm:$0xff]
    %v1725 = vld [vmem:[#allocation4 + $0x1a0] sm:$0xff]
    %v1726 = vld [vmem:[#allocation4 + $0x1a8] sm:$0xff]
    %v1727 = vld [vmem:[#allocation4 + $0x1b0] sm:$0xff]
    %v1728 = vld [vmem:[#allocation4 + $0x1b8] sm:$0xff]
    %v1729 = vld [vmem:[#allocation4 + $0x1c0] sm:$0xff]
    %v1730 = vld [vmem:[#allocation4 + $0x1c8] sm:$0xff]
    %v1731 = vld [vmem:[#allocation4 + $0x1d0] sm:$0xff]
    %v1732 = vld [vmem:[#allocation4 + $0x1d8] sm:$0xff]
    %v1733 = vld [vmem:[#allocation4 + $0x1e0] sm:$0xff]
    %v1734 = vld [vmem:[#allocation4 + $0x1e8] sm:$0xff]
    %v1735 = vld [vmem:[#allocation4 + $0x1f0] sm:$0xff]
    %v1736 = vld [vmem:[#allocation4 + $0x1f8] sm:$0xff]
    %v1737 = vld [vmem:[%s7] sm:$0x3]
    %v1739 = vlaneseq
    %v1740 = vshrl.u32 %v1739, 7
    %v1741 = vsub.s32 0, %v1740
    %v1742 = vrot.slane %v1737, %v1741
    %v1743 = vlaneseq
    %v1744 = vshrl.u32 %v1743, 7
    %v1745 = vsub.s32 1, %v1744
    %v1746 = vrot.slane %v1737, %v1745
    %v1813 = vunpack.c.l.b16 %v1673
    %v1814 = vunpack.c.h.b16 %v1673
    %v1815 = vunpack.c.l.b16 %v1674
    %v1816 = vunpack.c.h.b16 %v1674
    %v1817 = vunpack.c.l.b16 %v1675
    %v1818 = vunpack.c.h.b16 %v1675
    %v1819 = vunpack.c.l.b16 %v1676
    %v1820 = vunpack.c.h.b16 %v1676
    %v1821 = vunpack.c.l.b16 %v1677
    %v1822 = vunpack.c.h.b16 %v1677
    %v1823 = vunpack.c.l.b16 %v1678
    %v1824 = vunpack.c.h.b16 %v1678
    %v1825 = vunpack.c.l.b16 %v1679
    %v1826 = vunpack.c.h.b16 %v1679
    %v1827 = vunpack.c.l.b16 %v1680
    %v1828 = vunpack.c.h.b16 %v1680
    %v1829 = vunpack.c.l.b16 %v1681
    %v1830 = vunpack.c.h.b16 %v1681
    %v1831 = vunpack.c.l.b16 %v1682
    %v1832 = vunpack.c.h.b16 %v1682
    %v1833 = vunpack.c.l.b16 %v1683
    %v1834 = vunpack.c.h.b16 %v1683
    %v1835 = vunpack.c.l.b16 %v1684
    %v1836 = vunpack.c.h.b16 %v1684
    %v1837 = vunpack.c.l.b16 %v1685
    %v1838 = vunpack.c.h.b16 %v1685
    %v1839 = vunpack.c.l.b16 %v1686
    %v1840 = vunpack.c.h.b16 %v1686
    %v1841 = vunpack.c.l.b16 %v1687
    %v1842 = vunpack.c.h.b16 %v1687
    %v1843 = vunpack.c.l.b16 %v1688
    %v1844 = vunpack.c.h.b16 %v1688
    %v1845 = vunpack.c.l.b16 %v1689
    %v1846 = vunpack.c.h.b16 %v1689
    %v1847 = vunpack.c.l.b16 %v1690
    %v1848 = vunpack.c.h.b16 %v1690
    %v1849 = vunpack.c.l.b16 %v1691
    %v1850 = vunpack.c.h.b16 %v1691
    %v1851 = vunpack.c.l.b16 %v1692
    %v1852 = vunpack.c.h.b16 %v1692
    %v1853 = vunpack.c.l.b16 %v1693
    %v1854 = vunpack.c.h.b16 %v1693
    %v1855 = vunpack.c.l.b16 %v1694
    %v1856 = vunpack.c.h.b16 %v1694
    %v1857 = vunpack.c.l.b16 %v1695
    %v1858 = vunpack.c.h.b16 %v1695
    %v1859 = vunpack.c.l.b16 %v1696
    %v1860 = vunpack.c.h.b16 %v1696
    %v1861 = vunpack.c.l.b16 %v1697
    %v1862 = vunpack.c.h.b16 %v1697
    %v1863 = vunpack.c.l.b16 %v1698
    %v1864 = vunpack.c.h.b16 %v1698
    %v1865 = vunpack.c.l.b16 %v1699
    %v1866 = vunpack.c.h.b16 %v1699
    %v1867 = vunpack.c.l.b16 %v1700
    %v1868 = vunpack.c.h.b16 %v1700
    %v1869 = vunpack.c.l.b16 %v1701
    %v1870 = vunpack.c.h.b16 %v1701
    %v1871 = vunpack.c.l.b16 %v1702
    %v1872 = vunpack.c.h.b16 %v1702
    %v1873 = vunpack.c.l.b16 %v1703
    %v1874 = vunpack.c.h.b16 %v1703
    %v1875 = vunpack.c.l.b16 %v1704
    %v1876 = vunpack.c.h.b16 %v1704
    %v1877 = vunpack.c.l.b16 %v1705
    %v1878 = vunpack.c.h.b16 %v1705
    %v1879 = vunpack.c.l.b16 %v1706
    %v1880 = vunpack.c.h.b16 %v1706
    %v1881 = vunpack.c.l.b16 %v1707
    %v1882 = vunpack.c.h.b16 %v1707
    %v1883 = vunpack.c.l.b16 %v1708
    %v1884 = vunpack.c.h.b16 %v1708
    %v1885 = vunpack.c.l.b16 %v1709
    %v1886 = vunpack.c.h.b16 %v1709
    %v1887 = vunpack.c.l.b16 %v1710
    %v1888 = vunpack.c.h.b16 %v1710
    %v1889 = vunpack.c.l.b16 %v1711
    %v1890 = vunpack.c.h.b16 %v1711
    %v1891 = vunpack.c.l.b16 %v1712
    %v1892 = vunpack.c.h.b16 %v1712
    %v1893 = vunpack.c.l.b16 %v1713
    %v1894 = vunpack.c.h.b16 %v1713
    %v1895 = vunpack.c.l.b16 %v1714
    %v1896 = vunpack.c.h.b16 %v1714
    %v1897 = vunpack.c.l.b16 %v1715
    %v1898 = vunpack.c.h.b16 %v1715
    %v1899 = vunpack.c.l.b16 %v1716
    %v1900 = vunpack.c.h.b16 %v1716
    %v1901 = vunpack.c.l.b16 %v1717
    %v1902 = vunpack.c.h.b16 %v1717
    %v1903 = vunpack.c.l.b16 %v1718
    %v1904 = vunpack.c.h.b16 %v1718
    %v1905 = vunpack.c.l.b16 %v1719
    %v1906 = vunpack.c.h.b16 %v1719
    %v1907 = vunpack.c.l.b16 %v1720
    %v1908 = vunpack.c.h.b16 %v1720
    %v1909 = vunpack.c.l.b16 %v1721
    %v1910 = vunpack.c.h.b16 %v1721
    %v1911 = vunpack.c.l.b16 %v1722
    %v1912 = vunpack.c.h.b16 %v1722
    %v1913 = vunpack.c.l.b16 %v1723
    %v1914 = vunpack.c.h.b16 %v1723
    %v1915 = vunpack.c.l.b16 %v1724
    %v1916 = vunpack.c.h.b16 %v1724
    %v1917 = vunpack.c.l.b16 %v1725
    %v1918 = vunpack.c.h.b16 %v1725
    %v1919 = vunpack.c.l.b16 %v1726
    %v1920 = vunpack.c.h.b16 %v1726
    %v1921 = vunpack.c.l.b16 %v1727
    %v1922 = vunpack.c.h.b16 %v1727
    %v1923 = vunpack.c.l.b16 %v1728
    %v1924 = vunpack.c.h.b16 %v1728
    %v1925 = vunpack.c.l.b16 %v1729
    %v1926 = vunpack.c.h.b16 %v1729
    %v1927 = vunpack.c.l.b16 %v1730
    %v1928 = vunpack.c.h.b16 %v1730
    %v1929 = vunpack.c.l.b16 %v1731
    %v1930 = vunpack.c.h.b16 %v1731
    %v1931 = vunpack.c.l.b16 %v1732
    %v1932 = vunpack.c.h.b16 %v1732
    %v1933 = vunpack.c.l.b16 %v1733
    %v1934 = vunpack.c.h.b16 %v1733
    %v1935 = vunpack.c.l.b16 %v1734
    %v1936 = vunpack.c.h.b16 %v1734
    %v1937 = vunpack.c.l.b16 %v1735
    %v1938 = vunpack.c.h.b16 %v1735
    %v1939 = vunpack.c.l.b16 %v1736
    %v1940 = vunpack.c.h.b16 %v1736
    %v1941 = vpack.c.b16 %v1815, %v1813
    %v1942 = vpack.c.b16 %v1816, %v1814
    %v1943 = vpack.c.b16 %v1819, %v1817
    %v1944 = vpack.c.b16 %v1820, %v1818
    %v1945 = vpack.c.b16 %v1823, %v1821
    %v1946 = vpack.c.b16 %v1824, %v1822
    %v1947 = vpack.c.b16 %v1827, %v1825
    %v1948 = vpack.c.b16 %v1828, %v1826
    %v1949 = vpack.c.b16 %v1831, %v1829
    %v1950 = vpack.c.b16 %v1832, %v1830
    %v1951 = vpack.c.b16 %v1835, %v1833
    %v1952 = vpack.c.b16 %v1836, %v1834
    %v1953 = vpack.c.b16 %v1839, %v1837
    %v1954 = vpack.c.b16 %v1840, %v1838
    %v1955 = vpack.c.b16 %v1843, %v1841
    %v1956 = vpack.c.b16 %v1844, %v1842
    %v1957 = vpack.c.b16 %v1847, %v1845
    %v1958 = vpack.c.b16 %v1848, %v1846
    %v1959 = vpack.c.b16 %v1851, %v1849
    %v1960 = vpack.c.b16 %v1852, %v1850
    %v1961 = vpack.c.b16 %v1855, %v1853
    %v1962 = vpack.c.b16 %v1856, %v1854
    %v1963 = vpack.c.b16 %v1859, %v1857
    %v1964 = vpack.c.b16 %v1860, %v1858
    %v1965 = vpack.c.b16 %v1863, %v1861
    %v1966 = vpack.c.b16 %v1864, %v1862
    %v1967 = vpack.c.b16 %v1867, %v1865
    %v1968 = vpack.c.b16 %v1868, %v1866
    %v1969 = vpack.c.b16 %v1871, %v1869
    %v1970 = vpack.c.b16 %v1872, %v1870
    %v1971 = vpack.c.b16 %v1875, %v1873
    %v1972 = vpack.c.b16 %v1876, %v1874
    %v1973 = vpack.c.b16 %v1879, %v1877
    %v1974 = vpack.c.b16 %v1880, %v1878
    %v1975 = vpack.c.b16 %v1883, %v1881
    %v1976 = vpack.c.b16 %v1884, %v1882
    %v1977 = vpack.c.b16 %v1887, %v1885
    %v1978 = vpack.c.b16 %v1888, %v1886
    %v1979 = vpack.c.b16 %v1891, %v1889
    %v1980 = vpack.c.b16 %v1892, %v1890
    %v1981 = vpack.c.b16 %v1895, %v1893
    %v1982 = vpack.c.b16 %v1896, %v1894
    %v1983 = vpack.c.b16 %v1899, %v1897
    %v1984 = vpack.c.b16 %v1900, %v1898
    %v1985 = vpack.c.b16 %v1903, %v1901
    %v1986 = vpack.c.b16 %v1904, %v1902
    %v1987 = vpack.c.b16 %v1907, %v1905
    %v1988 = vpack.c.b16 %v1908, %v1906
    %v1989 = vpack.c.b16 %v1911, %v1909
    %v1990 = vpack.c.b16 %v1912, %v1910
    %v1991 = vpack.c.b16 %v1915, %v1913
    %v1992 = vpack.c.b16 %v1916, %v1914
    %v1993 = vpack.c.b16 %v1919, %v1917
    %v1994 = vpack.c.b16 %v1920, %v1918
    %v1995 = vpack.c.b16 %v1923, %v1921
    %v1996 = vpack.c.b16 %v1924, %v1922
    %v1997 = vpack.c.b16 %v1927, %v1925
    %v1998 = vpack.c.b16 %v1928, %v1926
    %v1999 = vpack.c.b16 %v1931, %v1929
    %v2000 = vpack.c.b16 %v1932, %v1930
    %v2001 = vpack.c.b16 %v1935, %v1933
    %v2002 = vpack.c.b16 %v1936, %v1934
    %v2003 = vpack.c.b16 %v1939, %v1937
    %v2004 = vpack.c.b16 %v1940, %v1938
    %2069 = vmatprep.subr.bf16.mxu0 %v1942
    %2070 = vmatpush1.bf16.msra.mxu0 %v1941
    %2071 = vmatprep.subr.bf16.mxu0 %v1944
    %2072 = vmatpush1.bf16.msra.mxu0 %v1943
    %2073 = vmatprep.subr.bf16.mxu0 %v1946
    %2074 = vmatpush1.bf16.msra.mxu0 %v1945
    %2075 = vmatprep.subr.bf16.mxu0 %v1948
    %2076 = vmatpush1.bf16.msra.mxu0 %v1947
    %2077 = vmatprep.subr.bf16.mxu0 %v1950
    %2078 = vmatpush1.bf16.msra.mxu0 %v1949
    %2079 = vmatprep.subr.bf16.mxu0 %v1952
    %2080 = vmatpush1.bf16.msra.mxu0 %v1951
    %2081 = vmatprep.subr.bf16.mxu0 %v1954
    %2082 = vmatpush1.bf16.msra.mxu0 %v1953
    %2083 = vmatprep.subr.bf16.mxu0 %v1956
    %2084 = vmatpush1.bf16.msra.mxu0 %v1955
    %2085 = vmatprep.subr.bf16.mxu0 %v1958
    %2086 = vmatpush1.bf16.msra.mxu0 %v1957
    %2087 = vmatprep.subr.bf16.mxu0 %v1960
    %2088 = vmatpush1.bf16.msra.mxu0 %v1959
    %2089 = vmatprep.subr.bf16.mxu0 %v1962
    %2090 = vmatpush1.bf16.msra.mxu0 %v1961
    %2091 = vmatprep.subr.bf16.mxu0 %v1964
    %2092 = vmatpush1.bf16.msra.mxu0 %v1963
    %2093 = vmatprep.subr.bf16.mxu0 %v1966
    %2094 = vmatpush1.bf16.msra.mxu0 %v1965
    %2095 = vmatprep.subr.bf16.mxu0 %v1968
    %2096 = vmatpush1.bf16.msra.mxu0 %v1967
    %2097 = vmatprep.subr.bf16.mxu0 %v1970
    %2098 = vmatpush1.bf16.msra.mxu0 %v1969
    %2099 = vmatprep.subr.bf16.mxu0 %v1972
    %2100 = vmatpush1.bf16.msra.mxu0 %v1971
    %2101 = vmatprep.mubr.bf16.mxu0 %v1670
    %2102 = vmatmul.mubr.bf16.gmra.mrb[0].mxu0 %v1669
    %v2103 = vpop.f32.mrb[0].mxu0
    %v2104 = vadd.f32 %v1742, %v2103
    %v2105 = vpop.f32.mrb[0].mxu0
    %v2106 = vadd.f32 %v1746, %v2105
    %v2107 = vpop.f32.mrb[0].mxu0
    %v2108 = vadd.f32 %v1742, %v2107
    %v2109 = vpop.f32.mrb[0].mxu0
    %v2110 = vadd.f32 %v1746, %v2109
    %2111 = vdwg.mxu0
    %2112 = vmatprep.subr.bf16.mxu0 %v1974
    %2113 = vmatpush1.bf16.msra.mxu0 %v1973
    %2114 = vmatprep.subr.bf16.mxu0 %v1976
    %2115 = vmatpush1.bf16.msra.mxu0 %v1975
    %2116 = vmatprep.subr.bf16.mxu0 %v1978
    %2117 = vmatpush1.bf16.msra.mxu0 %v1977
    %2118 = vmatprep.subr.bf16.mxu0 %v1980
    %2119 = vmatpush1.bf16.msra.mxu0 %v1979
    %2120 = vmatprep.subr.bf16.mxu0 %v1982
    %2121 = vmatpush1.bf16.msra.mxu0 %v1981
    %2122 = vmatprep.subr.bf16.mxu0 %v1984
    %2123 = vmatpush1.bf16.msra.mxu0 %v1983
    %2124 = vmatprep.subr.bf16.mxu0 %v1986
    %2125 = vmatpush1.bf16.msra.mxu0 %v1985
    %2126 = vmatprep.subr.bf16.mxu0 %v1988
    %2127 = vmatpush1.bf16.msra.mxu0 %v1987
    %2128 = vmatprep.subr.bf16.mxu0 %v1990
    %2129 = vmatpush1.bf16.msra.mxu0 %v1989
    %2130 = vmatprep.subr.bf16.mxu0 %v1992
    %2131 = vmatpush1.bf16.msra.mxu0 %v1991
    %2132 = vmatprep.subr.bf16.mxu0 %v1994
    %2133 = vmatpush1.bf16.msra.mxu0 %v1993
    %2134 = vmatprep.subr.bf16.mxu0 %v1996
    %2135 = vmatpush1.bf16.msra.mxu0 %v1995
    %2136 = vmatprep.subr.bf16.mxu0 %v1998
    %2137 = vmatpush1.bf16.msra.mxu0 %v1997
    %2138 = vmatprep.subr.bf16.mxu0 %v2000
    %2139 = vmatpush1.bf16.msra.mxu0 %v1999
    %2140 = vmatprep.subr.bf16.mxu0 %v2002
    %2141 = vmatpush1.bf16.msra.mxu0 %v2001
    %2142 = vmatprep.subr.bf16.mxu0 %v2004
    %2143 = vmatpush1.bf16.msra.mxu0 %v2003
    %2144 = vmatprep.mubr.bf16.mxu0 %v1672
    %2145 = vmatmul.mubr.bf16.gmra.mrb[0].mxu0 %v1671
    %v2146 = vpop.f32.mrb[0].mxu0
    %v2147 = vadd.f32 %v2104, %v2146
    %v2148 = vpop.f32.mrb[0].mxu0
    %v2149 = vadd.f32 %v2106, %v2148
    %v2150 = vpop.f32.mrb[0].mxu0
    %v2151 = vadd.f32 %v2108, %v2150
    %v2152 = vpop.f32.mrb[0].mxu0
    %v2153 = vadd.f32 %v2110, %v2152
    %2154 = vdwg.mxu0
    %v2155 = vmax.f32 %v2147, 0.0
    %v2156 = vmax.f32 %v2149, 0.0
    %v2157 = vmax.f32 %v2151, 0.0
    %v2158 = vmax.f32 %v2153, 0.0
    %v2159 = vpack.c.bf16 %v2157, %v2155
    %v2160 = vpack.c.bf16 %v2158, %v2156
    %v2161 = vld [vmem:[%s3] sm:$0xf]
    %v2162 = vld [vmem:[%s3 + $0x4] sm:$0xf]
    %v2163 = vld [vmem:[%s3 + $0x8] sm:$0xf]
    %v2164 = vld [vmem:[%s3 + $0xc] sm:$0xf]
    %v2165 = vld [vmem:[%s3 + $0x10] sm:$0xf]
    %v2166 = vld [vmem:[%s3 + $0x14] sm:$0xf]
    %v2167 = vld [vmem:[%s3 + $0x18] sm:$0xf]
    %v2168 = vld [vmem:[%s3 + $0x1c] sm:$0xf]
    %v2169 = vld [vmem:[%s3 + $0x20] sm:$0xf]
    %v2170 = vld [vmem:[%s3 + $0x24] sm:$0xf]
    %v2171 = vld [vmem:[%s3 + $0x28] sm:$0xf]
    %v2172 = vld [vmem:[%s3 + $0x2c] sm:$0xf]
    %v2173 = vld [vmem:[%s3 + $0x30] sm:$0xf]
    %v2174 = vld [vmem:[%s3 + $0x34] sm:$0xf]
    %v2175 = vld [vmem:[%s3 + $0x38] sm:$0xf]
    %v2176 = vld [vmem:[%s3 + $0x3c] sm:$0xf]
    %v2177 = vld [vmem:[%s3 + $0x40] sm:$0xf]
    %v2178 = vld [vmem:[%s3 + $0x44] sm:$0xf]
    %v2179 = vld [vmem:[%s3 + $0x48] sm:$0xf]
    %v2180 = vld [vmem:[%s3 + $0x4c] sm:$0xf]
    %v2181 = vld [vmem:[%s3 + $0x50] sm:$0xf]
    %v2182 = vld [vmem:[%s3 + $0x54] sm:$0xf]
    %v2183 = vld [vmem:[%s3 + $0x58] sm:$0xf]
    %v2184 = vld [vmem:[%s3 + $0x5c] sm:$0xf]
    %v2185 = vld [vmem:[%s3 + $0x60] sm:$0xf]
    %v2186 = vld [vmem:[%s3 + $0x64] sm:$0xf]
    %v2187 = vld [vmem:[%s3 + $0x68] sm:$0xf]
    %v2188 = vld [vmem:[%s3 + $0x6c] sm:$0xf]
    %v2189 = vld [vmem:[%s3 + $0x70] sm:$0xf]
    %v2190 = vld [vmem:[%s3 + $0x74] sm:$0xf]
    %v2191 = vld [vmem:[%s3 + $0x78] sm:$0xf]
    %v2192 = vld [vmem:[%s3 + $0x7c] sm:$0xf]
    %v2193 = vld [vmem:[%s8] sm:$0x1]
    %v2195 = vlaneseq
    %v2196 = vshrl.u32 %v2195, 7
    %v2197 = vsub.s32 0, %v2196
    %v2198 = vrot.slane %v2193, %v2197
    %v2232 = vunpack.c.l.b16 %v2161
    %v2233 = vunpack.c.l.b16 %v2162
    %v2234 = vunpack.c.l.b16 %v2163
    %v2235 = vunpack.c.l.b16 %v2164
    %v2236 = vunpack.c.l.b16 %v2165
    %v2237 = vunpack.c.l.b16 %v2166
    %v2238 = vunpack.c.l.b16 %v2167
    %v2239 = vunpack.c.l.b16 %v2168
    %v2240 = vunpack.c.l.b16 %v2169
    %v2241 = vunpack.c.l.b16 %v2170
    %v2242 = vunpack.c.l.b16 %v2171
    %v2243 = vunpack.c.l.b16 %v2172
    %v2244 = vunpack.c.l.b16 %v2173
    %v2245 = vunpack.c.l.b16 %v2174
    %v2246 = vunpack.c.l.b16 %v2175
    %v2247 = vunpack.c.l.b16 %v2176
    %v2248 = vunpack.c.l.b16 %v2177
    %v2249 = vunpack.c.l.b16 %v2178
    %v2250 = vunpack.c.l.b16 %v2179
    %v2251 = vunpack.c.l.b16 %v2180
    %v2252 = vunpack.c.l.b16 %v2181
    %v2253 = vunpack.c.l.b16 %v2182
    %v2254 = vunpack.c.l.b16 %v2183
    %v2255 = vunpack.c.l.b16 %v2184
    %v2256 = vunpack.c.l.b16 %v2185
    %v2257 = vunpack.c.l.b16 %v2186
    %v2258 = vunpack.c.l.b16 %v2187
    %v2259 = vunpack.c.l.b16 %v2188
    %v2260 = vunpack.c.l.b16 %v2189
    %v2261 = vunpack.c.l.b16 %v2190
    %v2262 = vunpack.c.l.b16 %v2191
    %v2263 = vunpack.c.l.b16 %v2192
    %v2264 = vpack.c.b16 %v2233, %v2232
    %v2265 = vpack.c.b16 %v2235, %v2234
    %v2266 = vpack.c.b16 %v2237, %v2236
    %v2267 = vpack.c.b16 %v2239, %v2238
    %v2268 = vpack.c.b16 %v2241, %v2240
    %v2269 = vpack.c.b16 %v2243, %v2242
    %v2270 = vpack.c.b16 %v2245, %v2244
    %v2271 = vpack.c.b16 %v2247, %v2246
    %v2272 = vpack.c.b16 %v2249, %v2248
    %v2273 = vpack.c.b16 %v2251, %v2250
    %v2274 = vpack.c.b16 %v2253, %v2252
    %v2275 = vpack.c.b16 %v2255, %v2254
    %v2276 = vpack.c.b16 %v2257, %v2256
    %v2277 = vpack.c.b16 %v2259, %v2258
    %v2278 = vpack.c.b16 %v2261, %v2260
    %v2279 = vpack.c.b16 %v2263, %v2262
    %2296 = vmatprep.subr.bf16.mxu0 0
    %2297 = vmatpush1.bf16.msra.mxu0 %v2264
    %2298 = vmatprep.subr.bf16.mxu0 0
    %2299 = vmatpush1.bf16.msra.mxu0 %v2265
    %2300 = vmatprep.subr.bf16.mxu0 0
    %2301 = vmatpush1.bf16.msra.mxu0 %v2266
    %2302 = vmatprep.subr.bf16.mxu0 0
    %2303 = vmatpush1.bf16.msra.mxu0 %v2267
    %2304 = vmatprep.subr.bf16.mxu0 0
    %2305 = vmatpush1.bf16.msra.mxu0 %v2268
    %2306 = vmatprep.subr.bf16.mxu0 0
    %2307 = vmatpush1.bf16.msra.mxu0 %v2269
    %2308 = vmatprep.subr.bf16.mxu0 0
    %2309 = vmatpush1.bf16.msra.mxu0 %v2270
    %2310 = vmatprep.subr.bf16.mxu0 0
    %2311 = vmatpush1.bf16.msra.mxu0 %v2271
    %2312 = vmatprep.subr.bf16.mxu0 0
    %2313 = vmatpush1.bf16.msra.mxu0 %v2272
    %2314 = vmatprep.subr.bf16.mxu0 0
    %2315 = vmatpush1.bf16.msra.mxu0 %v2273
    %2316 = vmatprep.subr.bf16.mxu0 0
    %2317 = vmatpush1.bf16.msra.mxu0 %v2274
    %2318 = vmatprep.subr.bf16.mxu0 0
    %2319 = vmatpush1.bf16.msra.mxu0 %v2275
    %2320 = vmatprep.subr.bf16.mxu0 0
    %2321 = vmatpush1.bf16.msra.mxu0 %v2276
    %2322 = vmatprep.subr.bf16.mxu0 0
    %2323 = vmatpush1.bf16.msra.mxu0 %v2277
    %2324 = vmatprep.subr.bf16.mxu0 0
    %2325 = vmatpush1.bf16.msra.mxu0 %v2278
    %2326 = vmatprep.subr.bf16.mxu0 0
    %2327 = vmatpush1.bf16.msra.mxu0 %v2279
    %2328 = vmatprep.mubr.bf16.mxu0 %v2160
    %2329 = vmatmul.mubr.bf16.gmra.mrb[0].mxu0 %v2159
    %v2330 = vpop.f32.mrb[0].mxu0
    %v2331 = vadd.f32 %v2198, %v2330
    %v2332 = vpop.f32.mrb[0].mxu0
    %v2333 = vpop.f32.mrb[0].mxu0
    %v2334 = vadd.f32 %v2198, %v2333
    %v2335 = vpop.f32.mrb[0].mxu0
    %2336 = vdwg.mxu0
    %v2337 = vmax.f32 %v2331, 0.0
    %v2338 = vmax.f32 %v2334, 0.0
    %v2339 = vpack.c.bf16 %v2338, %v2337
    %v2340 = vld [vmem:[#allocation6] sm:$0xf]
    %v2341 = vld [vmem:[#allocation6 + $0x4] sm:$0xf]
    %v2342 = vld [vmem:[#allocation6 + $0x8] sm:$0xf]
    %v2343 = vld [vmem:[#allocation6 + $0xc] sm:$0xf]
    %v2344 = vld [vmem:[#allocation6 + $0x10] sm:$0xf]
    %v2345 = vld [vmem:[#allocation6 + $0x14] sm:$0xf]
    %v2346 = vld [vmem:[#allocation6 + $0x18] sm:$0xf]
    %v2347 = vld [vmem:[#allocation6 + $0x1c] sm:$0xf]
    %v2348 = vld [vmem:[#allocation6 + $0x20] sm:$0xf]
    %v2349 = vld [vmem:[#allocation6 + $0x24] sm:$0xf]
    %v2350 = vld [vmem:[#allocation6 + $0x28] sm:$0xf]
    %v2351 = vld [vmem:[#allocation6 + $0x2c] sm:$0xf]
    %v2352 = vld [vmem:[#allocation6 + $0x30] sm:$0xf]
    %v2353 = vld [vmem:[#allocation6 + $0x34] sm:$0xf]
    %v2354 = vld [vmem:[#allocation6 + $0x38] sm:$0xf]
    %v2355 = vld [vmem:[#allocation6 + $0x3c] sm:$0xf]
    %v2356 = vld [vmem:[%s9] sm:$0x1]
    %v2358 = vlaneseq
    %v2359 = vshrl.u32 %v2358, 7
    %v2360 = vsub.s32 0, %v2359
    %v2361 = vrot.slane %v2356, %v2360
    %v2379 = vunpack.c.l.b16 %v2340
    %v2380 = vunpack.c.l.b16 %v2341
    %v2381 = vunpack.c.l.b16 %v2342
    %v2382 = vunpack.c.l.b16 %v2343
    %v2383 = vunpack.c.l.b16 %v2344
    %v2384 = vunpack.c.l.b16 %v2345
    %v2385 = vunpack.c.l.b16 %v2346
    %v2386 = vunpack.c.l.b16 %v2347
    %v2387 = vunpack.c.l.b16 %v2348
    %v2388 = vunpack.c.l.b16 %v2349
    %v2389 = vunpack.c.l.b16 %v2350
    %v2390 = vunpack.c.l.b16 %v2351
    %v2391 = vunpack.c.l.b16 %v2352
    %v2392 = vunpack.c.l.b16 %v2353
    %v2393 = vunpack.c.l.b16 %v2354
    %v2394 = vunpack.c.l.b16 %v2355
    %v2395 = vpack.c.b16 %v2380, %v2379
    %v2396 = vpack.c.b16 %v2382, %v2381
    %v2397 = vpack.c.b16 %v2384, %v2383
    %v2398 = vpack.c.b16 %v2386, %v2385
    %v2399 = vpack.c.b16 %v2388, %v2387
    %v2400 = vpack.c.b16 %v2390, %v2389
    %v2401 = vpack.c.b16 %v2392, %v2391
    %v2402 = vpack.c.b16 %v2394, %v2393
    %2411 = vmatprep.subr.bf16.mxu0 0
    %2412 = vmatpush1.bf16.msra.mxu0 %v2395
    %2413 = vmatprep.subr.bf16.mxu0 0
    %2414 = vmatpush1.bf16.msra.mxu0 %v2396
    %2415 = vmatprep.subr.bf16.mxu0 0
    %2416 = vmatpush1.bf16.msra.mxu0 %v2397
    %2417 = vmatprep.subr.bf16.mxu0 0
    %2418 = vmatpush1.bf16.msra.mxu0 %v2398
    %2419 = vmatprep.subr.bf16.mxu0 0
    %2420 = vmatpush1.bf16.msra.mxu0 %v2399
    %2421 = vmatprep.subr.bf16.mxu0 0
    %2422 = vmatpush1.bf16.msra.mxu0 %v2400
    %2423 = vmatprep.subr.bf16.mxu0 0
    %2424 = vmatpush1.bf16.msra.mxu0 %v2401
    %2425 = vmatprep.subr.bf16.mxu0 0
    %2426 = vmatpush1.bf16.msra.mxu0 %v2402
    %2427 = vmatprep.subr.bf16.mxu0 0
    %2428 = vmatpush1.bf16.msra.mxu0 0
    %2429 = vmatprep.subr.bf16.mxu0 0
    %2430 = vmatpush1.bf16.msra.mxu0 0
    %2431 = vmatprep.subr.bf16.mxu0 0
    %2432 = vmatpush1.bf16.msra.mxu0 0
    %2433 = vmatprep.subr.bf16.mxu0 0
    %2434 = vmatpush1.bf16.msra.mxu0 0
    %2435 = vmatprep.subr.bf16.mxu0 0
    %2436 = vmatpush1.bf16.msra.mxu0 0
    %2437 = vmatprep.subr.bf16.mxu0 0
    %2438 = vmatpush1.bf16.msra.mxu0 0
    %2439 = vmatprep.subr.bf16.mxu0 0
    %2440 = vmatpush1.bf16.msra.mxu0 0
    %2441 = vmatprep.subr.bf16.mxu0 0
    %2442 = vmatpush1.bf16.msra.mxu0 0
    %2443 = vmatprep.mubr.bf16.mxu0 0
    %2444 = vmatmul.mubr.bf16.gmra.mrb[0].mxu0 %v2339
    %v2445 = vpop.f32.mrb[0].mxu0
    %v2446 = vadd.f32 %v2361, %v2445
    %v2447 = vpop.f32.mrb[0].mxu0
    %v2448 = vpop.f32.mrb[0].mxu0
    %v2449 = vadd.f32 %v2361, %v2448
    %v2450 = vpop.f32.mrb[0].mxu0
    %2451 = vdwg.mxu0
    %v2452 = vmax.f32 %v2446, 0.0
    %v2453 = vmax.f32 %v2449, 0.0
    %v2454 = vpack.c.bf16 %v2453, %v2452
    %v2455 = vld [vmem:[#allocation7] sm:$0xf]
    %v2456 = vld [vmem:[#allocation7 + $0x4] sm:$0xf]
    %v2457 = vld [vmem:[#allocation7 + $0x8] sm:$0xf]
    %v2458 = vld [vmem:[#allocation7 + $0xc] sm:$0xf]
    %v2459 = vld [vmem:[#allocation7 + $0x10] sm:$0xf]
    %v2460 = vld [vmem:[#allocation7 + $0x14] sm:$0xf]
    %v2461 = vld [vmem:[#allocation7 + $0x18] sm:$0xf]
    %v2462 = vld [vmem:[#allocation7 + $0x1c] sm:$0xf]
    %v2463 = vld [vmem:[#allocation7 + $0x20] sm:$0xf]
    %v2464 = vld [vmem:[#allocation7 + $0x24] sm:$0xf]
    %v2465 = vld [vmem:[#allocation7 + $0x28] sm:$0xf]
    %v2466 = vld [vmem:[#allocation7 + $0x2c] sm:$0xf]
    %v2467 = vld [vmem:[#allocation7 + $0x30] sm:$0xf]
    %v2468 = vld [vmem:[#allocation7 + $0x34] sm:$0xf]
    %v2469 = vld [vmem:[#allocation7 + $0x38] sm:$0xf]
    %v2470 = vld [vmem:[#allocation7 + $0x3c] sm:$0xf]
    %v2471 = vld [vmem:[%s10] sm:$0x1]
    %v2473 = vlaneseq
    %v2474 = vshrl.u32 %v2473, 7
    %v2475 = vsub.s32 0, %v2474
    %v2476 = vrot.slane %v2471, %v2475
    %v2494 = vunpack.c.l.b16 %v2455
    %v2495 = vunpack.c.l.b16 %v2456
    %v2496 = vunpack.c.l.b16 %v2457
    %v2497 = vunpack.c.l.b16 %v2458
    %v2498 = vunpack.c.l.b16 %v2459
    %v2499 = vunpack.c.l.b16 %v2460
    %v2500 = vunpack.c.l.b16 %v2461
    %v2501 = vunpack.c.l.b16 %v2462
    %v2502 = vunpack.c.l.b16 %v2463
    %v2503 = vunpack.c.l.b16 %v2464
    %v2504 = vunpack.c.l.b16 %v2465
    %v2505 = vunpack.c.l.b16 %v2466
    %v2506 = vunpack.c.l.b16 %v2467
    %v2507 = vunpack.c.l.b16 %v2468
    %v2508 = vunpack.c.l.b16 %v2469
    %v2509 = vunpack.c.l.b16 %v2470
    %v2510 = vpack.c.b16 %v2495, %v2494
    %v2511 = vpack.c.b16 %v2497, %v2496
    %v2512 = vpack.c.b16 %v2499, %v2498
    %v2513 = vpack.c.b16 %v2501, %v2500
    %v2514 = vpack.c.b16 %v2503, %v2502
    %v2515 = vpack.c.b16 %v2505, %v2504
    %v2516 = vpack.c.b16 %v2507, %v2506
    %v2517 = vpack.c.b16 %v2509, %v2508
    %2526 = vmatprep.subr.bf16.mxu0 0
    %2527 = vmatpush1.bf16.msra.mxu0 %v2510
    %2528 = vmatprep.subr.bf16.mxu0 0
    %2529 = vmatpush1.bf16.msra.mxu0 %v2511
    %2530 = vmatprep.subr.bf16.mxu0 0
    %2531 = vmatpush1.bf16.msra.mxu0 %v2512
    %2532 = vmatprep.subr.bf16.mxu0 0
    %2533 = vmatpush1.bf16.msra.mxu0 %v2513
    %2534 = vmatprep.subr.bf16.mxu0 0
    %2535 = vmatpush1.bf16.msra.mxu0 %v2514
    %2536 = vmatprep.subr.bf16.mxu0 0
    %2537 = vmatpush1.bf16.msra.mxu0 %v2515
    %2538 = vmatprep.subr.bf16.mxu0 0
    %2539 = vmatpush1.bf16.msra.mxu0 %v2516
    %2540 = vmatprep.subr.bf16.mxu0 0
    %2541 = vmatpush1.bf16.msra.mxu0 %v2517
    %2542 = vmatprep.subr.bf16.mxu0 0
    %2543 = vmatpush1.bf16.msra.mxu0 0
    %2544 = vmatprep.subr.bf16.mxu0 0
    %2545 = vmatpush1.bf16.msra.mxu0 0
    %2546 = vmatprep.subr.bf16.mxu0 0
    %2547 = vmatpush1.bf16.msra.mxu0 0
    %2548 = vmatprep.subr.bf16.mxu0 0
    %2549 = vmatpush1.bf16.msra.mxu0 0
    %2550 = vmatprep.subr.bf16.mxu0 0
    %2551 = vmatpush1.bf16.msra.mxu0 0
    %2552 = vmatprep.subr.bf16.mxu0 0
    %2553 = vmatpush1.bf16.msra.mxu0 0
    %2554 = vmatprep.subr.bf16.mxu0 0
    %2555 = vmatpush1.bf16.msra.mxu0 0
    %2556 = vmatprep.subr.bf16.mxu0 0
    %2557 = vmatpush1.bf16.msra.mxu0 0
    %2558 = vmatprep.mubr.bf16.mxu0 0
    %2559 = vmatmul.mubr.bf16.gmra.mrb[0].mxu0 %v2454
    %v2560 = vpop.f32.mrb[0].mxu0
    %v2561 = vadd.f32 %v2476, %v2560
    %v2562 = vpop.f32.mrb[0].mxu0
    %v2563 = vpop.f32.mrb[0].mxu0
    %v2564 = vadd.f32 %v2476, %v2563
    %v2565 = vpop.f32.mrb[0].mxu0
    %2566 = vdwg.mxu0
    %v2567 = vpack.c.bf16 %v2564, %v2561
    %v2569 = vunpack.c.l.b16 %v2567
    %v2570 = vunpack.c.h.b16 %v2567
    %v2571 = vpack.c.b16 %v2569, %v2569
    %v2572 = vpack.c.b16 %v2570, %v2570
    %2575 = vst [vmem:[%s11] sm:$0xf] %v2571
    %2576 = vst [vmem:[%s11 + $0x4] sm:$0xf] %v2572
    // Predicated region
    $region62: #{_net_forward_prepared.1} parent=1 // pred_check
      _
    $region63: #{_net_forward_prepared.1} parent=1 // pred_check_branch
      %2578 = sbr.rel (0) target = $region65
    $region64: #{_net_forward_prepared.1} parent=1 // pred_region
      _
    $region65: #{_net_forward_prepared.1} parent=1 // pred_fallthru
      _
    // Predicated region
    $region66: #{_net_forward_prepared.1} parent=1 // pred_check
      _
    $region67: #{_net_forward_prepared.1} parent=1 // pred_check_branch
      %2580 = sbr.rel (0) target = $region69
    $region68: #{_net_forward_prepared.1} parent=1 // pred_region
      _
    $region69: #{_net_forward_prepared.1} parent=1 // pred_fallthru
      _
    %2581 = vsyncpa [#allocation3], 1
    %2582 = vsyncpa [#allocation5], 1
    %2583 = vsyncpa [#allocation8], 1

</llo_original>
